<compile_context>
chip_gen: v7x
topology: tpu7x:2x2x1
jax: 0.10.0
libtpu: 0.0.40
codegen_flags: <defaults>
</compile_context>

<pallas_src>
import functools

import jax
import jax.numpy as jnp
import numpy as np
from jax.experimental import pallas as pl
from jax.experimental.pallas import tpu as pltpu


def _round_up(x, m):
    return (x + m - 1) // m * m


def _simple_block_kernel(w_ref, mask_ref, x_ref, o_ref, *,
                         nb, stride, wp, m_out, inv_count,
                         eps=1e-5, neg_slope=0.01):
    """Fused conv3x3 + InstanceNorm2d + LeakyReLU for `nb` batch elements.

    w_ref:    (9, C_out, C_in)         conv weight, tap-major (tap = ki*3 + kj)
    mask_ref: (1, m_out)               1.0 on valid output lanes, 0.0 on padding
    x_ref:    (nb, stride, C_in, Lq)   zero-padded input, flattened + phase-split
    o_ref:    (nb, C_out, m_out)       output at virtual row width Wp (lane-dense)
    """
    mask = mask_ref[...]                                    # (1, m_out) f32

    for b in range(nb):                                     # small, unrolled
        # ---- Conv2d(3x3, padding=1, stride) as 9 shifted matmul-accumulates.
        acc = None
        for ki in range(3):
            for kj in range(3):
                off = ki * wp + kj                          # flat tap offset
                xs = x_ref[b, off % stride, :, pl.ds(off // stride, m_out)]
                part = jnp.dot(w_ref[ki * 3 + kj], xs,      # bf16 x bf16 -> f32
                               preferred_element_type=jnp.float32)
                acc = part if acc is None else acc + part   # (C_out, m_out) f32

        # ---- InstanceNorm2d (affine=False, eps=1e-5, biased variance):
        #      one reduction pass (sum and sum-of-squares together), f32 math,
        #      padded lanes excluded via the mask and divided by the true count.
        accm = acc * mask
        s1 = jnp.sum(accm, axis=-1, keepdims=True)          # sum(y) over valid lanes
        s2 = jnp.sum(accm * acc, axis=-1, keepdims=True)    # sum(y*y) over valid lanes
        mean = s1 * inv_count
        var = jnp.maximum(s2 * inv_count - mean * mean, 0.0)
        y = (acc - mean) * jax.lax.rsqrt(var + eps)

        # ---- LeakyReLU (PyTorch default negative_slope = 0.01).
        y = jnp.where(y > 0, y, neg_slope * y)
        o_ref[b] = y.astype(o_ref.dtype)


def simple_block_forward(x, weight, stride=1, *, compute_dtype=jnp.bfloat16,
                         batch_block=None):
    """x: (N, C_in, H, W) NCHW; weight: (C_out, C_in, 3, 3). Returns NCHW."""
    n, c_in, h, w = x.shape
    c_out = weight.shape[0]
    assert weight.shape == (c_out, c_in, 3, 3)
    assert stride >= 1

    hp, wp = h + 2, w + 2                       # padding = 1 on each side
    ho = (hp - 3) // stride + 1
    wo = (wp - 3) // stride + 1

    # Conv output is computed at a "virtual" flat width of Wp lanes per output
    # row, rounded up to a lane-dense multiple of 128.
    m_out = _round_up(ho * wp, 128)
    max_off = 2 * wp + 2                        # largest tap offset (ki=kj=2)
    # Per-phase flat length so every tap's lane-slice stays in bounds.
    lq = _round_up(max(m_out + max_off // stride + 1,
                       -(-(hp * wp) // stride)), 128)

    # ---- Input: cast -> pad -> flatten -> phase-split (cheap XLA ops, ~1x
    #      traffic; no 9x im2col materialization in HBM).
    xc = x.astype(compute_dtype)
    xp = jnp.pad(xc, ((0, 0), (0, 0), (1, 1), (1, 1)))
    x_flat = xp.reshape(n, c_in, hp * wp)
    x_flat = jnp.pad(x_flat, ((0, 0), (0, 0), (0, stride * lq - hp * wp)))
    # Phase p holds flat elements at positions q*stride + p.
    x_ph = x_flat.reshape(n, c_in, lq, stride).transpose(0, 3, 1, 2)  # (N, s, C_in, Lq)

    # ---- Weight: tap-major (ki*3+kj, C_out, C_in), cast for the MXU.
    w9 = jnp.transpose(weight, (2, 3, 0, 1)).reshape(9, c_out, c_in)
    w9 = w9.astype(compute_dtype)

    # ---- Valid-lane mask for the InstanceNorm statistics (built host-side).
    t = np.arange(m_out)
    valid = ((t % wp) < wo) & (t < ho * wp)
    mask = jnp.asarray(valid.astype(np.float32)[None, :])              # (1, m_out)

    # ---- Several batch elements per grid step (amortize per-step overhead).
    out_dtype = x.dtype
    itemsize_in = jnp.dtype(compute_dtype).itemsize
    itemsize_out = jnp.dtype(out_dtype).itemsize
    per_batch = stride * c_in * lq * itemsize_in + c_out * m_out * itemsize_out
    if batch_block is None:
        batch_block = max(1, min(n, (2 << 20) // max(per_batch, 1)))
    while n % batch_block:
        batch_block -= 1
    nb = batch_block
    grid = (n // nb,)

    # ---- Explicit VMEM budget: double-buffered blocks + resident weight/mask.
    vmem_limit = int(min(max(4 * nb * per_batch
                             + 2 * (w9.size * itemsize_in + mask.size * 4)
                             + (1 << 20),
                             16 * 1024 * 1024),
                         64 * 1024 * 1024))

    cost = pl.CostEstimate(
        flops=2 * n * c_out * 9 * c_in * ho * wo,
        transcendentals=n * c_out,                     # one rsqrt per (n, c)
        bytes_accessed=int(n * c_in * stride * lq * itemsize_in
                           + w9.size * itemsize_in
                           + n * c_out * m_out * itemsize_out),
    )

    kernel = functools.partial(
        _simple_block_kernel, nb=nb, stride=stride, wp=wp, m_out=m_out,
        inv_count=1.0 / float(ho * wo))

    out_flat = pl.pallas_call(
        kernel,
        out_shape=jax.ShapeDtypeStruct((n, c_out, m_out), out_dtype),
        grid_spec=pltpu.PrefetchScalarGridSpec(
            num_scalar_prefetch=0,
            grid=grid,
            in_specs=[
                pl.BlockSpec((9, c_out, c_in), lambda g: (0, 0, 0)),          # weight (resident)
                pl.BlockSpec((1, m_out), lambda g: (0, 0)),                   # mask   (resident)
                pl.BlockSpec((nb, stride, c_in, lq), lambda g: (g, 0, 0, 0)), # padded input
            ],
            out_specs=pl.BlockSpec((nb, c_out, m_out), lambda g: (g, 0, 0)),
        ),
        compiler_params=pltpu.CompilerParams(
            dimension_semantics=("parallel",),
            vmem_limit_bytes=vmem_limit),
        cost_estimate=cost,
    )(w9, mask, x_ph)

    # Drop the virtual-width padding: (N, C_out, Ho*Wp) -> (N, C_out, Ho, Wo).
    out = out_flat[:, :, :ho * wp].reshape(n, c_out, ho, wp)[:, :, :, :wo]
    return out


def _reference(x, weight, stride=1, cast_dtype=None):
    """Pure-JAX/XLA reference (Conv2d -> InstanceNorm2d -> LeakyReLU)."""
    xc = x if cast_dtype is None else x.astype(cast_dtype)
    wc = weight if cast_dtype is None else weight.astype(cast_dtype)
    y = jax.lax.conv_general_dilated(
        xc, wc, window_strides=(stride, stride), padding=((1, 1), (1, 1)),
        dimension_numbers=("NCHW", "OIHW", "NCHW"),
        preferred_element_type=jnp.float32)
    mean = jnp.mean(y, axis=(2, 3), keepdims=True)
    var = jnp.mean((y - mean) ** 2, axis=(2, 3), keepdims=True)
    y_hat = (y - mean) * jax.lax.rsqrt(var + 1e-5)
    return jnp.where(y_hat > 0, y_hat, 0.01 * y_hat)


if __name__ == "__main__":
    key = jax.random.PRNGKey(0)
    kx, kw = jax.random.split(key)

    N, C_IN, C_OUT, H, W = 2, 4, 8, 16, 16
    x = jax.random.normal(kx, (N, C_IN, H, W), dtype=jnp.float32)
    # Conv2d(in=4, out=8, kernel=3, bias=False) weight.
    weight = jax.random.normal(kw, (C_OUT, C_IN, 3, 3), dtype=jnp.float32) * 0.1

    for stride in (1, 2):
        out = jax.block_until_ready(simple_block_forward(x, weight, stride=stride))
        ho = (H + 2 - 3) // stride + 1
        wo = (W + 2 - 3) // stride + 1
        assert out.shape == (N, C_OUT, ho, wo), out.shape

        # Tight check vs. a reference using the same bf16 matmul operands
        # (f32 accumulation / normalization, like the kernel).
        ref_bf16 = _reference(x, weight, stride=stride, cast_dtype=jnp.bfloat16)
        assert jnp.allclose(out, ref_bf16, atol=2e-3, rtol=2e-3), (
            float(jnp.max(jnp.abs(out - ref_bf16))))

        # Sanity check vs. the full-f32 reference (slack accounts for the
        # intentional bf16 rounding of the matmul operands).
        ref_f32 = _reference(x, weight, stride=stride)
        assert jnp.allclose(out, ref_f32, atol=5e-2, rtol=5e-2), (
            float(jnp.max(jnp.abs(out - ref_f32))))

    print("KERNEL_OK")
</pallas_src>

<mosaic_0001>
module attributes {stable_mosaic.version = 11 : i64} {
  func.func @_simple_block_kernel(%arg0: i32, %arg1: memref<9x8x4xbf16, #tpu.memory_space<vmem>>, %arg2: memref<1x384xf32, #tpu.memory_space<vmem>>, %arg3: memref<2x1x4x512xbf16, #tpu.memory_space<vmem>>, %arg4: memref<2x8x384xf32, #tpu.memory_space<vmem>>) attributes {dimension_semantics = [#tpu.dimension_semantics<parallel>], iteration_bounds = array<i64: 1>, scalar_prefetch = 0 : i64, scratch_operands = 0 : i64, tpu.core_type = #tpu.core_type<tc>, window_params = [{pipeline_mode = #tpu.pipeline_mode<synchronous>, transform_indices = @transform_0, window_bounds = array<i64: 9, 8, 4>}, {pipeline_mode = #tpu.pipeline_mode<synchronous>, transform_indices = @transform_1, window_bounds = array<i64: 1, 384>}, {transform_indices = @transform_2, window_bounds = array<i64: 2, 1, 4, 512>}, {transform_indices = @transform_3, window_bounds = array<i64: 2, 8, 384>}]} {
    %c0 = arith.constant 0 : index
    %c0_0 = arith.constant 0 : index
    %0 = vector.load %arg2[%c0, %c0_0] : memref<1x384xf32, #tpu.memory_space<vmem>>, vector<1x384xf32>
    %c0_1 = arith.constant 0 : index
    %c0_2 = arith.constant 0 : index
    %c0_3 = arith.constant 0 : index
    %c0_4 = arith.constant 0 : index
    %1 = vector.load %arg3[%c0_1, %c0_2, %c0_3, %c0_4] : memref<2x1x4x512xbf16, #tpu.memory_space<vmem>>, vector<1x1x4x384xbf16>
    %2 = vector.shape_cast %1 : vector<1x1x4x384xbf16> to vector<4x384xbf16>
    %c0_5 = arith.constant 0 : index
    %c0_6 = arith.constant 0 : index
    %c0_7 = arith.constant 0 : index
    %3 = vector.load %arg1[%c0_5, %c0_6, %c0_7] : memref<9x8x4xbf16, #tpu.memory_space<vmem>>, vector<1x8x4xbf16>
    %4 = vector.shape_cast %3 : vector<1x8x4xbf16> to vector<8x4xbf16>
    %cst = arith.constant dense<0.000000e+00> : vector<8x384xf32>
    %5 = tpu.matmul %4, %2, %cst {dimension_numbers = #tpu.dot_dimension_numbers<[1], [0], [0], [1], [0, 0, 1, 1], [], []>} : vector<8x4xbf16>, vector<4x384xbf16>, vector<8x384xf32> -> vector<8x384xf32>
    %c0_8 = arith.constant 0 : index
    %c0_9 = arith.constant 0 : index
    %c0_10 = arith.constant 0 : index
    %c1 = arith.constant 1 : index
    %6 = vector.load %arg3[%c0_8, %c0_9, %c0_10, %c1] : memref<2x1x4x512xbf16, #tpu.memory_space<vmem>>, vector<1x1x4x384xbf16>
    %7 = vector.shape_cast %6 : vector<1x1x4x384xbf16> to vector<4x384xbf16>
    %c1_11 = arith.constant 1 : index
    %c0_12 = arith.constant 0 : index
    %c0_13 = arith.constant 0 : index
    %8 = vector.load %arg1[%c1_11, %c0_12, %c0_13] : memref<9x8x4xbf16, #tpu.memory_space<vmem>>, vector<1x8x4xbf16>
    %9 = vector.shape_cast %8 : vector<1x8x4xbf16> to vector<8x4xbf16>
    %cst_14 = arith.constant dense<0.000000e+00> : vector<8x384xf32>
    %10 = tpu.matmul %9, %7, %cst_14 {dimension_numbers = #tpu.dot_dimension_numbers<[1], [0], [0], [1], [0, 0, 1, 1], [], []>} : vector<8x4xbf16>, vector<4x384xbf16>, vector<8x384xf32> -> vector<8x384xf32>
    %11 = arith.addf %5, %10 : vector<8x384xf32>
    %c0_15 = arith.constant 0 : index
    %c0_16 = arith.constant 0 : index
    %c0_17 = arith.constant 0 : index
    %c2 = arith.constant 2 : index
    %12 = vector.load %arg3[%c0_15, %c0_16, %c0_17, %c2] : memref<2x1x4x512xbf16, #tpu.memory_space<vmem>>, vector<1x1x4x384xbf16>
    %13 = vector.shape_cast %12 : vector<1x1x4x384xbf16> to vector<4x384xbf16>
    %c2_18 = arith.constant 2 : index
    %c0_19 = arith.constant 0 : index
    %c0_20 = arith.constant 0 : index
    %14 = vector.load %arg1[%c2_18, %c0_19, %c0_20] : memref<9x8x4xbf16, #tpu.memory_space<vmem>>, vector<1x8x4xbf16>
    %15 = vector.shape_cast %14 : vector<1x8x4xbf16> to vector<8x4xbf16>
    %cst_21 = arith.constant dense<0.000000e+00> : vector<8x384xf32>
    %16 = tpu.matmul %15, %13, %cst_21 {dimension_numbers = #tpu.dot_dimension_numbers<[1], [0], [0], [1], [0, 0, 1, 1], [], []>} : vector<8x4xbf16>, vector<4x384xbf16>, vector<8x384xf32> -> vector<8x384xf32>
    %17 = arith.addf %11, %16 : vector<8x384xf32>
    %c0_22 = arith.constant 0 : index
    %c0_23 = arith.constant 0 : index
    %c0_24 = arith.constant 0 : index
    %c18 = arith.constant 18 : index
    %18 = vector.load %arg3[%c0_22, %c0_23, %c0_24, %c18] : memref<2x1x4x512xbf16, #tpu.memory_space<vmem>>, vector<1x1x4x384xbf16>
    %19 = vector.shape_cast %18 : vector<1x1x4x384xbf16> to vector<4x384xbf16>
    %c3 = arith.constant 3 : index
    %c0_25 = arith.constant 0 : index
    %c0_26 = arith.constant 0 : index
    %20 = vector.load %arg1[%c3, %c0_25, %c0_26] : memref<9x8x4xbf16, #tpu.memory_space<vmem>>, vector<1x8x4xbf16>
    %21 = vector.shape_cast %20 : vector<1x8x4xbf16> to vector<8x4xbf16>
    %cst_27 = arith.constant dense<0.000000e+00> : vector<8x384xf32>
    %22 = tpu.matmul %21, %19, %cst_27 {dimension_numbers = #tpu.dot_dimension_numbers<[1], [0], [0], [1], [0, 0, 1, 1], [], []>} : vector<8x4xbf16>, vector<4x384xbf16>, vector<8x384xf32> -> vector<8x384xf32>
    %23 = arith.addf %17, %22 : vector<8x384xf32>
    %c0_28 = arith.constant 0 : index
    %c0_29 = arith.constant 0 : index
    %c0_30 = arith.constant 0 : index
    %c19 = arith.constant 19 : index
    %24 = vector.load %arg3[%c0_28, %c0_29, %c0_30, %c19] : memref<2x1x4x512xbf16, #tpu.memory_space<vmem>>, vector<1x1x4x384xbf16>
    %25 = vector.shape_cast %24 : vector<1x1x4x384xbf16> to vector<4x384xbf16>
    %c4 = arith.constant 4 : index
    %c0_31 = arith.constant 0 : index
    %c0_32 = arith.constant 0 : index
    %26 = vector.load %arg1[%c4, %c0_31, %c0_32] : memref<9x8x4xbf16, #tpu.memory_space<vmem>>, vector<1x8x4xbf16>
    %27 = vector.shape_cast %26 : vector<1x8x4xbf16> to vector<8x4xbf16>
    %cst_33 = arith.constant dense<0.000000e+00> : vector<8x384xf32>
    %28 = tpu.matmul %27, %25, %cst_33 {dimension_numbers = #tpu.dot_dimension_numbers<[1], [0], [0], [1], [0, 0, 1, 1], [], []>} : vector<8x4xbf16>, vector<4x384xbf16>, vector<8x384xf32> -> vector<8x384xf32>
    %29 = arith.addf %23, %28 : vector<8x384xf32>
    %c0_34 = arith.constant 0 : index
    %c0_35 = arith.constant 0 : index
    %c0_36 = arith.constant 0 : index
    %c20 = arith.constant 20 : index
    %30 = vector.load %arg3[%c0_34, %c0_35, %c0_36, %c20] : memref<2x1x4x512xbf16, #tpu.memory_space<vmem>>, vector<1x1x4x384xbf16>
    %31 = vector.shape_cast %30 : vector<1x1x4x384xbf16> to vector<4x384xbf16>
    %c5 = arith.constant 5 : index
    %c0_37 = arith.constant 0 : index
    %c0_38 = arith.constant 0 : index
    %32 = vector.load %arg1[%c5, %c0_37, %c0_38] : memref<9x8x4xbf16, #tpu.memory_space<vmem>>, vector<1x8x4xbf16>
    %33 = vector.shape_cast %32 : vector<1x8x4xbf16> to vector<8x4xbf16>
    %cst_39 = arith.constant dense<0.000000e+00> : vector<8x384xf32>
    %34 = tpu.matmul %33, %31, %cst_39 {dimension_numbers = #tpu.dot_dimension_numbers<[1], [0], [0], [1], [0, 0, 1, 1], [], []>} : vector<8x4xbf16>, vector<4x384xbf16>, vector<8x384xf32> -> vector<8x384xf32>
    %35 = arith.addf %29, %34 : vector<8x384xf32>
    %c0_40 = arith.constant 0 : index
    %c0_41 = arith.constant 0 : index
    %c0_42 = arith.constant 0 : index
    %c36 = arith.constant 36 : index
    %36 = vector.load %arg3[%c0_40, %c0_41, %c0_42, %c36] : memref<2x1x4x512xbf16, #tpu.memory_space<vmem>>, vector<1x1x4x384xbf16>
    %37 = vector.shape_cast %36 : vector<1x1x4x384xbf16> to vector<4x384xbf16>
    %c6 = arith.constant 6 : index
    %c0_43 = arith.constant 0 : index
    %c0_44 = arith.constant 0 : index
    %38 = vector.load %arg1[%c6, %c0_43, %c0_44] : memref<9x8x4xbf16, #tpu.memory_space<vmem>>, vector<1x8x4xbf16>
    %39 = vector.shape_cast %38 : vector<1x8x4xbf16> to vector<8x4xbf16>
    %cst_45 = arith.constant dense<0.000000e+00> : vector<8x384xf32>
    %40 = tpu.matmul %39, %37, %cst_45 {dimension_numbers = #tpu.dot_dimension_numbers<[1], [0], [0], [1], [0, 0, 1, 1], [], []>} : vector<8x4xbf16>, vector<4x384xbf16>, vector<8x384xf32> -> vector<8x384xf32>
    %41 = arith.addf %35, %40 : vector<8x384xf32>
    %c0_46 = arith.constant 0 : index
    %c0_47 = arith.constant 0 : index
    %c0_48 = arith.constant 0 : index
    %c37 = arith.constant 37 : index
    %42 = vector.load %arg3[%c0_46, %c0_47, %c0_48, %c37] : memref<2x1x4x512xbf16, #tpu.memory_space<vmem>>, vector<1x1x4x384xbf16>
    %43 = vector.shape_cast %42 : vector<1x1x4x384xbf16> to vector<4x384xbf16>
    %c7 = arith.constant 7 : index
    %c0_49 = arith.constant 0 : index
    %c0_50 = arith.constant 0 : index
    %44 = vector.load %arg1[%c7, %c0_49, %c0_50] : memref<9x8x4xbf16, #tpu.memory_space<vmem>>, vector<1x8x4xbf16>
    %45 = vector.shape_cast %44 : vector<1x8x4xbf16> to vector<8x4xbf16>
    %cst_51 = arith.constant dense<0.000000e+00> : vector<8x384xf32>
    %46 = tpu.matmul %45, %43, %cst_51 {dimension_numbers = #tpu.dot_dimension_numbers<[1], [0], [0], [1], [0, 0, 1, 1], [], []>} : vector<8x4xbf16>, vector<4x384xbf16>, vector<8x384xf32> -> vector<8x384xf32>
    %47 = arith.addf %41, %46 : vector<8x384xf32>
    %c0_52 = arith.constant 0 : index
    %c0_53 = arith.constant 0 : index
    %c0_54 = arith.constant 0 : index
    %c38 = arith.constant 38 : index
    %48 = vector.load %arg3[%c0_52, %c0_53, %c0_54, %c38] : memref<2x1x4x512xbf16, #tpu.memory_space<vmem>>, vector<1x1x4x384xbf16>
    %49 = vector.shape_cast %48 : vector<1x1x4x384xbf16> to vector<4x384xbf16>
    %c8 = arith.constant 8 : index
    %c0_55 = arith.constant 0 : index
    %c0_56 = arith.constant 0 : index
    %50 = vector.load %arg1[%c8, %c0_55, %c0_56] : memref<9x8x4xbf16, #tpu.memory_space<vmem>>, vector<1x8x4xbf16>
    %51 = vector.shape_cast %50 : vector<1x8x4xbf16> to vector<8x4xbf16>
    %cst_57 = arith.constant dense<0.000000e+00> : vector<8x384xf32>
    %52 = tpu.matmul %51, %49, %cst_57 {dimension_numbers = #tpu.dot_dimension_numbers<[1], [0], [0], [1], [0, 0, 1, 1], [], []>} : vector<8x4xbf16>, vector<4x384xbf16>, vector<8x384xf32> -> vector<8x384xf32>
    %53 = arith.addf %47, %52 : vector<8x384xf32>
    %54 = vector.broadcast %0 : vector<1x384xf32> to vector<8x384xf32>
    %55 = arith.mulf %53, %54 : vector<8x384xf32>
    %cst_58 = arith.constant dense<0.000000e+00> : vector<8xf32>
    %56 = vector.multi_reduction <add>, %55, %cst_58 [1] : vector<8x384xf32> to vector<8xf32>
    %57 = vector.shape_cast %56 : vector<8xf32> to vector<8x1xf32>
    %58 = arith.mulf %55, %53 : vector<8x384xf32>
    %cst_59 = arith.constant dense<0.000000e+00> : vector<8xf32>
    %59 = vector.multi_reduction <add>, %58, %cst_59 [1] : vector<8x384xf32> to vector<8xf32>
    %60 = vector.shape_cast %59 : vector<8xf32> to vector<8x1xf32>
    %cst_60 = arith.constant 3.906250e-03 : f32
    %61 = vector.broadcast %cst_60 : f32 to vector<8x1xf32>
    %62 = arith.mulf %57, %61 : vector<8x1xf32>
    %cst_61 = arith.constant 3.906250e-03 : f32
    %63 = vector.broadcast %cst_61 : f32 to vector<8x1xf32>
    %64 = arith.mulf %60, %63 : vector<8x1xf32>
    %65 = arith.mulf %62, %62 : vector<8x1xf32>
    %66 = arith.subf %64, %65 : vector<8x1xf32>
    %cst_62 = arith.constant 0.000000e+00 : f32
    %67 = vector.broadcast %cst_62 : f32 to vector<8x1xf32>
    %68 = arith.maximumf %66, %67 : vector<8x1xf32>
    %69 = vector.broadcast %62 : vector<8x1xf32> to vector<8x384xf32>
    %70 = arith.subf %53, %69 : vector<8x384xf32>
    %cst_63 = arith.constant 9.99999974E-6 : f32
    %71 = vector.broadcast %cst_63 : f32 to vector<8x1xf32>
    %72 = arith.addf %68, %71 : vector<8x1xf32>
    %73 = math.rsqrt %72 : vector<8x1xf32>
    %74 = vector.broadcast %73 : vector<8x1xf32> to vector<8x384xf32>
    %75 = arith.mulf %70, %74 : vector<8x384xf32>
    %cst_64 = arith.constant 0.000000e+00 : f32
    %76 = vector.broadcast %cst_64 : f32 to vector<8x384xf32>
    %77 = arith.cmpf ogt, %75, %76 : vector<8x384xf32>
    %cst_65 = arith.constant 0.00999999977 : f32
    %78 = vector.broadcast %cst_65 : f32 to vector<8x384xf32>
    %79 = arith.mulf %78, %75 : vector<8x384xf32>
    %80 = arith.select %77, %75, %79 : vector<8x384xi1>, vector<8x384xf32>
    %c0_66 = arith.constant 0 : index
    %c0_67 = arith.constant 0 : index
    %c0_68 = arith.constant 0 : index
    %81 = vector.load %arg4[%c0_66, %c0_67, %c0_68] : memref<2x8x384xf32, #tpu.memory_space<vmem>>, vector<1x8x384xf32>
    %82 = vector.shape_cast %81 : vector<1x8x384xf32> to vector<8x384xf32>
    %83 = vector.shape_cast %80 : vector<8x384xf32> to vector<1x8x384xf32>
    tpu.vector_store %arg4[%c0_66, %c0_67, %c0_68], %83 {strides = array<i32>} : memref<2x8x384xf32, #tpu.memory_space<vmem>>, vector<1x8x384xf32>,
    %c1_69 = arith.constant 1 : index
    %c0_70 = arith.constant 0 : index
    %c0_71 = arith.constant 0 : index
    %c0_72 = arith.constant 0 : index
    %84 = vector.load %arg3[%c1_69, %c0_70, %c0_71, %c0_72] : memref<2x1x4x512xbf16, #tpu.memory_space<vmem>>, vector<1x1x4x384xbf16>
    %85 = vector.shape_cast %84 : vector<1x1x4x384xbf16> to vector<4x384xbf16>
    %c0_73 = arith.constant 0 : index
    %c0_74 = arith.constant 0 : index
    %c0_75 = arith.constant 0 : index
    %86 = vector.load %arg1[%c0_73, %c0_74, %c0_75] : memref<9x8x4xbf16, #tpu.memory_space<vmem>>, vector<1x8x4xbf16>
    %87 = vector.shape_cast %86 : vector<1x8x4xbf16> to vector<8x4xbf16>
    %cst_76 = arith.constant dense<0.000000e+00> : vector<8x384xf32>
    %88 = tpu.matmul %87, %85, %cst_76 {dimension_numbers = #tpu.dot_dimension_numbers<[1], [0], [0], [1], [0, 0, 1, 1], [], []>} : vector<8x4xbf16>, vector<4x384xbf16>, vector<8x384xf32> -> vector<8x384xf32>
    %c1_77 = arith.constant 1 : index
    %c0_78 = arith.constant 0 : index
    %c0_79 = arith.constant 0 : index
    %c1_80 = arith.constant 1 : index
    %89 = vector.load %arg3[%c1_77, %c0_78, %c0_79, %c1_80] : memref<2x1x4x512xbf16, #tpu.memory_space<vmem>>, vector<1x1x4x384xbf16>
    %90 = vector.shape_cast %89 : vector<1x1x4x384xbf16> to vector<4x384xbf16>
    %c1_81 = arith.constant 1 : index
    %c0_82 = arith.constant 0 : index
    %c0_83 = arith.constant 0 : index
    %91 = vector.load %arg1[%c1_81, %c0_82, %c0_83] : memref<9x8x4xbf16, #tpu.memory_space<vmem>>, vector<1x8x4xbf16>
    %92 = vector.shape_cast %91 : vector<1x8x4xbf16> to vector<8x4xbf16>
    %cst_84 = arith.constant dense<0.000000e+00> : vector<8x384xf32>
    %93 = tpu.matmul %92, %90, %cst_84 {dimension_numbers = #tpu.dot_dimension_numbers<[1], [0], [0], [1], [0, 0, 1, 1], [], []>} : vector<8x4xbf16>, vector<4x384xbf16>, vector<8x384xf32> -> vector<8x384xf32>
    %94 = arith.addf %88, %93 : vector<8x384xf32>
    %c1_85 = arith.constant 1 : index
    %c0_86 = arith.constant 0 : index
    %c0_87 = arith.constant 0 : index
    %c2_88 = arith.constant 2 : index
    %95 = vector.load %arg3[%c1_85, %c0_86, %c0_87, %c2_88] : memref<2x1x4x512xbf16, #tpu.memory_space<vmem>>, vector<1x1x4x384xbf16>
    %96 = vector.shape_cast %95 : vector<1x1x4x384xbf16> to vector<4x384xbf16>
    %c2_89 = arith.constant 2 : index
    %c0_90 = arith.constant 0 : index
    %c0_91 = arith.constant 0 : index
    %97 = vector.load %arg1[%c2_89, %c0_90, %c0_91] : memref<9x8x4xbf16, #tpu.memory_space<vmem>>, vector<1x8x4xbf16>
    %98 = vector.shape_cast %97 : vector<1x8x4xbf16> to vector<8x4xbf16>
    %cst_92 = arith.constant dense<0.000000e+00> : vector<8x384xf32>
    %99 = tpu.matmul %98, %96, %cst_92 {dimension_numbers = #tpu.dot_dimension_numbers<[1], [0], [0], [1], [0, 0, 1, 1], [], []>} : vector<8x4xbf16>, vector<4x384xbf16>, vector<8x384xf32> -> vector<8x384xf32>
    %100 = arith.addf %94, %99 : vector<8x384xf32>
    %c1_93 = arith.constant 1 : index
    %c0_94 = arith.constant 0 : index
    %c0_95 = arith.constant 0 : index
    %c18_96 = arith.constant 18 : index
    %101 = vector.load %arg3[%c1_93, %c0_94, %c0_95, %c18_96] : memref<2x1x4x512xbf16, #tpu.memory_space<vmem>>, vector<1x1x4x384xbf16>
    %102 = vector.shape_cast %101 : vector<1x1x4x384xbf16> to vector<4x384xbf16>
    %c3_97 = arith.constant 3 : index
    %c0_98 = arith.constant 0 : index
    %c0_99 = arith.constant 0 : index
    %103 = vector.load %arg1[%c3_97, %c0_98, %c0_99] : memref<9x8x4xbf16, #tpu.memory_space<vmem>>, vector<1x8x4xbf16>
    %104 = vector.shape_cast %103 : vector<1x8x4xbf16> to vector<8x4xbf16>
    %cst_100 = arith.constant dense<0.000000e+00> : vector<8x384xf32>
    %105 = tpu.matmul %104, %102, %cst_100 {dimension_numbers = #tpu.dot_dimension_numbers<[1], [0], [0], [1], [0, 0, 1, 1], [], []>} : vector<8x4xbf16>, vector<4x384xbf16>, vector<8x384xf32> -> vector<8x384xf32>
    %106 = arith.addf %100, %105 : vector<8x384xf32>
    %c1_101 = arith.constant 1 : index
    %c0_102 = arith.constant 0 : index
    %c0_103 = arith.constant 0 : index
    %c19_104 = arith.constant 19 : index
    %107 = vector.load %arg3[%c1_101, %c0_102, %c0_103, %c19_104] : memref<2x1x4x512xbf16, #tpu.memory_space<vmem>>, vector<1x1x4x384xbf16>
    %108 = vector.shape_cast %107 : vector<1x1x4x384xbf16> to vector<4x384xbf16>
    %c4_105 = arith.constant 4 : index
    %c0_106 = arith.constant 0 : index
    %c0_107 = arith.constant 0 : index
    %109 = vector.load %arg1[%c4_105, %c0_106, %c0_107] : memref<9x8x4xbf16, #tpu.memory_space<vmem>>, vector<1x8x4xbf16>
    %110 = vector.shape_cast %109 : vector<1x8x4xbf16> to vector<8x4xbf16>
    %cst_108 = arith.constant dense<0.000000e+00> : vector<8x384xf32>
    %111 = tpu.matmul %110, %108, %cst_108 {dimension_numbers = #tpu.dot_dimension_numbers<[1], [0], [0], [1], [0, 0, 1, 1], [], []>} : vector<8x4xbf16>, vector<4x384xbf16>, vector<8x384xf32> -> vector<8x384xf32>
    %112 = arith.addf %106, %111 : vector<8x384xf32>
    %c1_109 = arith.constant 1 : index
    %c0_110 = arith.constant 0 : index
    %c0_111 = arith.constant 0 : index
    %c20_112 = arith.constant 20 : index
    %113 = vector.load %arg3[%c1_109, %c0_110, %c0_111, %c20_112] : memref<2x1x4x512xbf16, #tpu.memory_space<vmem>>, vector<1x1x4x384xbf16>
    %114 = vector.shape_cast %113 : vector<1x1x4x384xbf16> to vector<4x384xbf16>
    %c5_113 = arith.constant 5 : index
    %c0_114 = arith.constant 0 : index
    %c0_115 = arith.constant 0 : index
    %115 = vector.load %arg1[%c5_113, %c0_114, %c0_115] : memref<9x8x4xbf16, #tpu.memory_space<vmem>>, vector<1x8x4xbf16>
    %116 = vector.shape_cast %115 : vector<1x8x4xbf16> to vector<8x4xbf16>
    %cst_116 = arith.constant dense<0.000000e+00> : vector<8x384xf32>
    %117 = tpu.matmul %116, %114, %cst_116 {dimension_numbers = #tpu.dot_dimension_numbers<[1], [0], [0], [1], [0, 0, 1, 1], [], []>} : vector<8x4xbf16>, vector<4x384xbf16>, vector<8x384xf32> -> vector<8x384xf32>
    %118 = arith.addf %112, %117 : vector<8x384xf32>
    %c1_117 = arith.constant 1 : index
    %c0_118 = arith.constant 0 : index
    %c0_119 = arith.constant 0 : index
    %c36_120 = arith.constant 36 : index
    %119 = vector.load %arg3[%c1_117, %c0_118, %c0_119, %c36_120] : memref<2x1x4x512xbf16, #tpu.memory_space<vmem>>, vector<1x1x4x384xbf16>
    %120 = vector.shape_cast %119 : vector<1x1x4x384xbf16> to vector<4x384xbf16>
    %c6_121 = arith.constant 6 : index
    %c0_122 = arith.constant 0 : index
    %c0_123 = arith.constant 0 : index
    %121 = vector.load %arg1[%c6_121, %c0_122, %c0_123] : memref<9x8x4xbf16, #tpu.memory_space<vmem>>, vector<1x8x4xbf16>
    %122 = vector.shape_cast %121 : vector<1x8x4xbf16> to vector<8x4xbf16>
    %cst_124 = arith.constant dense<0.000000e+00> : vector<8x384xf32>
    %123 = tpu.matmul %122, %120, %cst_124 {dimension_numbers = #tpu.dot_dimension_numbers<[1], [0], [0], [1], [0, 0, 1, 1], [], []>} : vector<8x4xbf16>, vector<4x384xbf16>, vector<8x384xf32> -> vector<8x384xf32>
    %124 = arith.addf %118, %123 : vector<8x384xf32>
    %c1_125 = arith.constant 1 : index
    %c0_126 = arith.constant 0 : index
    %c0_127 = arith.constant 0 : index
    %c37_128 = arith.constant 37 : index
    %125 = vector.load %arg3[%c1_125, %c0_126, %c0_127, %c37_128] : memref<2x1x4x512xbf16, #tpu.memory_space<vmem>>, vector<1x1x4x384xbf16>
    %126 = vector.shape_cast %125 : vector<1x1x4x384xbf16> to vector<4x384xbf16>
    %c7_129 = arith.constant 7 : index
    %c0_130 = arith.constant 0 : index
    %c0_131 = arith.constant 0 : index
    %127 = vector.load %arg1[%c7_129, %c0_130, %c0_131] : memref<9x8x4xbf16, #tpu.memory_space<vmem>>, vector<1x8x4xbf16>
    %128 = vector.shape_cast %127 : vector<1x8x4xbf16> to vector<8x4xbf16>
    %cst_132 = arith.constant dense<0.000000e+00> : vector<8x384xf32>
    %129 = tpu.matmul %128, %126, %cst_132 {dimension_numbers = #tpu.dot_dimension_numbers<[1], [0], [0], [1], [0, 0, 1, 1], [], []>} : vector<8x4xbf16>, vector<4x384xbf16>, vector<8x384xf32> -> vector<8x384xf32>
    %130 = arith.addf %124, %129 : vector<8x384xf32>
    %c1_133 = arith.constant 1 : index
    %c0_134 = arith.constant 0 : index
    %c0_135 = arith.constant 0 : index
    %c38_136 = arith.constant 38 : index
    %131 = vector.load %arg3[%c1_133, %c0_134, %c0_135, %c38_136] : memref<2x1x4x512xbf16, #tpu.memory_space<vmem>>, vector<1x1x4x384xbf16>
    %132 = vector.shape_cast %131 : vector<1x1x4x384xbf16> to vector<4x384xbf16>
    %c8_137 = arith.constant 8 : index
    %c0_138 = arith.constant 0 : index
    %c0_139 = arith.constant 0 : index
    %133 = vector.load %arg1[%c8_137, %c0_138, %c0_139] : memref<9x8x4xbf16, #tpu.memory_space<vmem>>, vector<1x8x4xbf16>
    %134 = vector.shape_cast %133 : vector<1x8x4xbf16> to vector<8x4xbf16>
    %cst_140 = arith.constant dense<0.000000e+00> : vector<8x384xf32>
    %135 = tpu.matmul %134, %132, %cst_140 {dimension_numbers = #tpu.dot_dimension_numbers<[1], [0], [0], [1], [0, 0, 1, 1], [], []>} : vector<8x4xbf16>, vector<4x384xbf16>, vector<8x384xf32> -> vector<8x384xf32>
    %136 = arith.addf %130, %135 : vector<8x384xf32>
    %137 = vector.broadcast %0 : vector<1x384xf32> to vector<8x384xf32>
    %138 = arith.mulf %136, %137 : vector<8x384xf32>
    %cst_141 = arith.constant dense<0.000000e+00> : vector<8xf32>
    %139 = vector.multi_reduction <add>, %138, %cst_141 [1] : vector<8x384xf32> to vector<8xf32>
    %140 = vector.shape_cast %139 : vector<8xf32> to vector<8x1xf32>
    %141 = arith.mulf %138, %136 : vector<8x384xf32>
    %cst_142 = arith.constant dense<0.000000e+00> : vector<8xf32>
    %142 = vector.multi_reduction <add>, %141, %cst_142 [1] : vector<8x384xf32> to vector<8xf32>
    %143 = vector.shape_cast %142 : vector<8xf32> to vector<8x1xf32>
    %cst_143 = arith.constant 3.906250e-03 : f32
    %144 = vector.broadcast %cst_143 : f32 to vector<8x1xf32>
    %145 = arith.mulf %140, %144 : vector<8x1xf32>
    %cst_144 = arith.constant 3.906250e-03 : f32
    %146 = vector.broadcast %cst_144 : f32 to vector<8x1xf32>
    %147 = arith.mulf %143, %146 : vector<8x1xf32>
    %148 = arith.mulf %145, %145 : vector<8x1xf32>
    %149 = arith.subf %147, %148 : vector<8x1xf32>
    %cst_145 = arith.constant 0.000000e+00 : f32
    %150 = vector.broadcast %cst_145 : f32 to vector<8x1xf32>
    %151 = arith.maximumf %149, %150 : vector<8x1xf32>
    %152 = vector.broadcast %145 : vector<8x1xf32> to vector<8x384xf32>
    %153 = arith.subf %136, %152 : vector<8x384xf32>
    %cst_146 = arith.constant 9.99999974E-6 : f32
    %154 = vector.broadcast %cst_146 : f32 to vector<8x1xf32>
    %155 = arith.addf %151, %154 : vector<8x1xf32>
    %156 = math.rsqrt %155 : vector<8x1xf32>
    %157 = vector.broadcast %156 : vector<8x1xf32> to vector<8x384xf32>
    %158 = arith.mulf %153, %157 : vector<8x384xf32>
    %cst_147 = arith.constant 0.000000e+00 : f32
    %159 = vector.broadcast %cst_147 : f32 to vector<8x384xf32>
    %160 = arith.cmpf ogt, %158, %159 : vector<8x384xf32>
    %cst_148 = arith.constant 0.00999999977 : f32
    %161 = vector.broadcast %cst_148 : f32 to vector<8x384xf32>
    %162 = arith.mulf %161, %158 : vector<8x384xf32>
    %163 = arith.select %160, %158, %162 : vector<8x384xi1>, vector<8x384xf32>
    %c1_149 = arith.constant 1 : index
    %c0_150 = arith.constant 0 : index
    %c0_151 = arith.constant 0 : index
    %164 = vector.load %arg4[%c1_149, %c0_150, %c0_151] : memref<2x8x384xf32, #tpu.memory_space<vmem>>, vector<1x8x384xf32>
    %165 = vector.shape_cast %164 : vector<1x8x384xf32> to vector<8x384xf32>
    %166 = vector.shape_cast %163 : vector<8x384xf32> to vector<1x8x384xf32>
    tpu.vector_store %arg4[%c1_149, %c0_150, %c0_151], %166 {strides = array<i32>} : memref<2x8x384xf32, #tpu.memory_space<vmem>>, vector<1x8x384xf32>,
    return
  }
  func.func @transform_0(%arg0: i32) -> (i32, i32, i32) {
    %c0_i32 = arith.constant 0 : i32
    %c0_i32_0 = arith.constant 0 : i32
    %c0_i32_1 = arith.constant 0 : i32
    %c0_i32_2 = arith.constant 0 : i32
    return %c0_i32, %c0_i32_0, %c0_i32_1 : i32, i32, i32
  }
  func.func @transform_1(%arg0: i32) -> (i32, i32) {
    %c0_i32 = arith.constant 0 : i32
    %c0_i32_0 = arith.constant 0 : i32
    %c0_i32_1 = arith.constant 0 : i32
    return %c0_i32, %c0_i32_0 : i32, i32
  }
  func.func @transform_2(%arg0: i32) -> (i32, i32, i32, i32) {
    %c0_i32 = arith.constant 0 : i32
    %c0_i32_0 = arith.constant 0 : i32
    %c0_i32_1 = arith.constant 0 : i32
    %c0_i32_2 = arith.constant 0 : i32
    return %arg0, %c0_i32, %c0_i32_0, %c0_i32_1 : i32, i32, i32, i32
  }
  func.func @transform_3(%arg0: i32) -> (i32, i32, i32) {
    %c0_i32 = arith.constant 0 : i32
    %c0_i32_0 = arith.constant 0 : i32
    %c0_i32_1 = arith.constant 0 : i32
    return %arg0, %c0_i32, %c0_i32_0 : i32, i32, i32
  }
}

</mosaic_0001>

<llo_original>
// kernel: tpu_custom_call.1
$region0: #{tpu_custom_call.1}
  #allocation0 [shape = 'u32[]', space=smem, size = 0x4, offset = 0x4, fixed_abs, tag = 'smem constant byte address 0x4 - core index']
  #allocation1 [shape = 'u32[144,128]{1,0:T(1,128)}', space=vmem, size = 0x12000, scoped, tag = 'internal scratch']
  %s0 = inlined_call_operand.vmem [shape: bf16[9,8,4], index: 0, kind: input, shape index: {}]
  %s1 = inlined_call_operand.vmem [shape: f32[1,384], index: 1, kind: input, shape index: {}]
  %s2 = inlined_call_operand.vmem [shape: bf16[2,1,4,512], index: 2, kind: input, shape index: {}]
  %s3 = inlined_call_operand.hbm [shape: f32[2,8,384], index: 3, kind: output, shape index: {}]
  %s4 = sld [smem:[#allocation0]]
  $region22: #{tpu_custom_call.1} parent=0
    _
  %s6 = ssub.s32 1, %s4
  %s7 = scalar_select 0, %s6, %s4
  $region1: #{tpu_custom_call.1} parent=0
    #allocation2 [shape = 'u8[24576]{0}', space=vmem, size = 0x6000, scoped, tag = 'output window, operand 0, single buffered']
    #allocation3 [shape = 's32[1]{0}', space=sflag, size = 0x4, scoped, tag = 'scoped memory for tpu_custom_call.1']
    %8 = vsyncpa [#allocation3], 0
    // Predicated region
    $region2: #{tpu_custom_call.1} parent=1 // pred_check
      _
    $region3: #{tpu_custom_call.1} parent=1 // pred_check_branch
      %10 = sbr.rel (0) target = $region5
    $region4: #{tpu_custom_call.1} parent=1 // pred_region
      _
    $region5: #{tpu_custom_call.1} parent=1 // pred_fallthru
      _
    // Predicated region
    $region6: #{tpu_custom_call.1} parent=1 // pred_check
      _
    $region7: #{tpu_custom_call.1} parent=1 // pred_check_branch
      %12 = sbr.rel (0) target = $region9
    $region8: #{tpu_custom_call.1} parent=1 // pred_region
      _
    $region9: #{tpu_custom_call.1} parent=1 // pred_fallthru
      _
    // Predicated region
    $region10: #{tpu_custom_call.1} parent=1 // pred_check
      _
    $region11: #{tpu_custom_call.1} parent=1 // pred_check_branch
      %14 = sbr.rel (0) target = $region13
    $region12: #{tpu_custom_call.1} parent=1 // pred_region
      _
    $region13: #{tpu_custom_call.1} parent=1 // pred_fallthru
      _
    %v16 = vld [vmem:[%s1] sm:$0x7]
    %v17 = vld [vmem:[%s2] sm:$0x3f]
    %v18 = vld [vmem:[%s0] sm:$0xf]
    %v19 = vld [vmem:[%s2] sm:$0xff]
    %s20 = scalar_lea.vmem %s0, 4
    %v21 = vld [vmem:[%s20] sm:$0xf]
    %v23 = vcombine.high %v19, %v19
    %v25 = vunpack.c.l.s4 1983009808
    %v26 = vunpack.c.0.s8 %v25
    %v27 = vlaneseq
    %v28 = vshrl.u32 %v27, 7
    %v29 = vsub.s32 %v26, %v28
    %v30 = vrot.slane %v19, %v29
    %v32 = vunpack.c.l.s4 1983009808
    %v33 = vunpack.c.0.s8 %v32
    %v34 = vlaneseq
    %v35 = vshrl.u32 %v34, 7
    %v36 = vsub.s32 %v33, %v35
    %v37 = vrot.slane %v23, %v36
    %v38 = vcombine.high %v30, %v30
    %v39 = vcombine.high %v37, %v37
    %40 = vrot.lane.b32.xlu0 %v30, 127
    %v41 = vpop.permute.xlu0 %40
    %42 = vrot.lane.b32.xlu0 %v38, 127
    %v43 = vpop.permute.xlu0 %42
    %44 = vrot.lane.b32.xlu0 %v37, 127
    %v45 = vpop.permute.xlu0 %44
    %46 = vrot.lane.b32.xlu0 %v39, 127
    %v47 = vpop.permute.xlu0 %46
    %vm48 = vcmask 1039360
    %v49 = vsel %vm48, %v41, %v43
    %v50 = vsel %vm48, %v43, %v45
    %v51 = vsel %vm48, %v45, %v47
    %vm52 = vcmask 31744
    %v54 = vsel %vm52, %v21, 0
    %vm56 = vcmask 1041408
    %v58 = vsel %vm56, %v49, 0
    %v61 = vsel %vm56, %v50, 0
    %v64 = vsel %vm56, %v51, 0
    %66 = vmatprep.subr.bf16.mxu0 %v61
    %67 = vmatpush1.bf16.msra.mxu0 %v58
    %68 = vmatprep.subr.bf16.mxu0 0
    %69 = vmatpush1.bf16.msra.mxu0 0
    %70 = vmatprep.subr.bf16.mxu0 0
    %71 = vmatpush1.bf16.msra.mxu0 0
    %72 = vmatprep.subr.bf16.mxu0 0
    %73 = vmatpush1.bf16.msra.mxu0 0
    %74 = vmatprep.subr.bf16.mxu0 0
    %75 = vmatpush1.bf16.msra.mxu0 0
    %76 = vmatprep.subr.bf16.mxu0 0
    %77 = vmatpush1.bf16.msra.mxu0 0
    %78 = vmatprep.subr.bf16.mxu0 0
    %79 = vmatpush1.bf16.msra.mxu0 0
    %80 = vmatprep.subr.bf16.mxu0 0
    %81 = vmatpush1.bf16.msra.mxu0 0
    %82 = vmatprep.subr.bf16.mxu0 0
    %83 = vmatpush1.bf16.msra.mxu0 0
    %84 = vmatprep.subr.bf16.mxu0 0
    %85 = vmatpush1.bf16.msra.mxu0 0
    %86 = vmatprep.subr.bf16.mxu0 0
    %87 = vmatpush1.bf16.msra.mxu0 0
    %88 = vmatprep.subr.bf16.mxu0 0
    %89 = vmatpush1.bf16.msra.mxu0 0
    %90 = vmatprep.subr.bf16.mxu0 0
    %91 = vmatpush1.bf16.msra.mxu0 0
    %92 = vmatprep.subr.bf16.mxu0 0
    %93 = vmatpush1.bf16.msra.mxu0 0
    %94 = vmatprep.subr.bf16.mxu0 0
    %95 = vmatpush1.bf16.msra.mxu0 0
    %96 = vmatprep.subr.bf16.mxu0 0
    %97 = vmatpush1.bf16.msra.mxu0 0
    %98 = vmatprep.mubr.bf16.mxu0 0
    %99 = vmatmul.mubr.bf16.gmra.mrb[0].mxu0 %v54
    %v100 = vpop.f32.mrb[0].mxu0
    %v101 = vadd.f32 0.0, %v100
    %v102 = vpop.f32.mrb[0].mxu0
    %v103 = vadd.f32 0.0, %v102
    %v104 = vpop.f32.mrb[0].mxu0
    %v105 = vpop.f32.mrb[0].mxu0
    %106 = vdwg.mxu0
    %107 = vmatprep.subr.bf16.mxu0 0
    %108 = vmatpush1.bf16.msra.mxu0 %v64
    %109 = vmatprep.subr.bf16.mxu0 0
    %110 = vmatpush1.bf16.msra.mxu0 0
    %111 = vmatprep.subr.bf16.mxu0 0
    %112 = vmatpush1.bf16.msra.mxu0 0
    %113 = vmatprep.subr.bf16.mxu0 0
    %114 = vmatpush1.bf16.msra.mxu0 0
    %115 = vmatprep.subr.bf16.mxu0 0
    %116 = vmatpush1.bf16.msra.mxu0 0
    %117 = vmatprep.subr.bf16.mxu0 0
    %118 = vmatpush1.bf16.msra.mxu0 0
    %119 = vmatprep.subr.bf16.mxu0 0
    %120 = vmatpush1.bf16.msra.mxu0 0
    %121 = vmatprep.subr.bf16.mxu0 0
    %122 = vmatpush1.bf16.msra.mxu0 0
    %123 = vmatprep.subr.bf16.mxu0 0
    %124 = vmatpush1.bf16.msra.mxu0 0
    %125 = vmatprep.subr.bf16.mxu0 0
    %126 = vmatpush1.bf16.msra.mxu0 0
    %127 = vmatprep.subr.bf16.mxu0 0
    %128 = vmatpush1.bf16.msra.mxu0 0
    %129 = vmatprep.subr.bf16.mxu0 0
    %130 = vmatpush1.bf16.msra.mxu0 0
    %131 = vmatprep.subr.bf16.mxu0 0
    %132 = vmatpush1.bf16.msra.mxu0 0
    %133 = vmatprep.subr.bf16.mxu0 0
    %134 = vmatpush1.bf16.msra.mxu0 0
    %135 = vmatprep.subr.bf16.mxu0 0
    %136 = vmatpush1.bf16.msra.mxu0 0
    %137 = vmatprep.subr.bf16.mxu0 0
    %138 = vmatpush1.bf16.msra.mxu0 0
    %139 = vmatprep.mubr.bf16.mxu0 0
    %140 = vmatmul.mubr.bf16.gmra.mrb[0].mxu0 %v54
    %v141 = vpop.f32.mrb[0].mxu0
    %v142 = vadd.f32 0.0, %v141
    %v143 = vpop.f32.mrb[0].mxu0
    %v144 = vpop.f32.mrb[0].mxu0
    %v145 = vpop.f32.mrb[0].mxu0
    %146 = vdwg.mxu0
    %v148 = vcombine.high %v17, %v17
    %v150 = vunpack.c.l.s4 1983009808
    %v151 = vunpack.c.0.s8 %v150
    %v152 = vlaneseq
    %v153 = vshrl.u32 %v152, 7
    %v154 = vsub.s32 %v151, %v153
    %v155 = vrot.slane %v17, %v154
    %v157 = vunpack.c.l.s4 1983009808
    %v158 = vunpack.c.0.s8 %v157
    %v159 = vlaneseq
    %v160 = vshrl.u32 %v159, 7
    %v161 = vsub.s32 %v158, %v160
    %v162 = vrot.slane %v148, %v161
    %v163 = vcombine.high %v155, %v155
    %v165 = vsel %vm52, %v18, 0
    %v168 = vsel %vm56, %v155, 0
    %v171 = vsel %vm56, %v163, 0
    %v174 = vsel %vm56, %v162, 0
    %176 = vmatprep.subr.bf16.mxu0 %v171
    %177 = vmatpush1.bf16.msra.mxu0 %v168
    %178 = vmatprep.subr.bf16.mxu0 0
    %179 = vmatpush1.bf16.msra.mxu0 0
    %180 = vmatprep.subr.bf16.mxu0 0
    %181 = vmatpush1.bf16.msra.mxu0 0
    %182 = vmatprep.subr.bf16.mxu0 0
    %183 = vmatpush1.bf16.msra.mxu0 0
    %184 = vmatprep.subr.bf16.mxu0 0
    %185 = vmatpush1.bf16.msra.mxu0 0
    %186 = vmatprep.subr.bf16.mxu0 0
    %187 = vmatpush1.bf16.msra.mxu0 0
    %188 = vmatprep.subr.bf16.mxu0 0
    %189 = vmatpush1.bf16.msra.mxu0 0
    %190 = vmatprep.subr.bf16.mxu0 0
    %191 = vmatpush1.bf16.msra.mxu0 0
    %192 = vmatprep.subr.bf16.mxu0 0
    %193 = vmatpush1.bf16.msra.mxu0 0
    %194 = vmatprep.subr.bf16.mxu0 0
    %195 = vmatpush1.bf16.msra.mxu0 0
    %196 = vmatprep.subr.bf16.mxu0 0
    %197 = vmatpush1.bf16.msra.mxu0 0
    %198 = vmatprep.subr.bf16.mxu0 0
    %199 = vmatpush1.bf16.msra.mxu0 0
    %200 = vmatprep.subr.bf16.mxu0 0
    %201 = vmatpush1.bf16.msra.mxu0 0
    %202 = vmatprep.subr.bf16.mxu0 0
    %203 = vmatpush1.bf16.msra.mxu0 0
    %204 = vmatprep.subr.bf16.mxu0 0
    %205 = vmatpush1.bf16.msra.mxu0 0
    %206 = vmatprep.subr.bf16.mxu0 0
    %207 = vmatpush1.bf16.msra.mxu0 0
    %208 = vmatprep.mubr.bf16.mxu0 0
    %209 = vmatmul.mubr.bf16.gmra.mrb[0].mxu0 %v165
    %v210 = vpop.f32.mrb[0].mxu0
    %v211 = vadd.f32 %v101, %v210
    %v212 = vpop.f32.mrb[0].mxu0
    %v213 = vadd.f32 %v103, %v212
    %v214 = vpop.f32.mrb[0].mxu0
    %v215 = vpop.f32.mrb[0].mxu0
    %216 = vdwg.mxu0
    %217 = vmatprep.subr.bf16.mxu0 0
    %218 = vmatpush1.bf16.msra.mxu0 %v174
    %219 = vmatprep.subr.bf16.mxu0 0
    %220 = vmatpush1.bf16.msra.mxu0 0
    %221 = vmatprep.subr.bf16.mxu0 0
    %222 = vmatpush1.bf16.msra.mxu0 0
    %223 = vmatprep.subr.bf16.mxu0 0
    %224 = vmatpush1.bf16.msra.mxu0 0
    %225 = vmatprep.subr.bf16.mxu0 0
    %226 = vmatpush1.bf16.msra.mxu0 0
    %227 = vmatprep.subr.bf16.mxu0 0
    %228 = vmatpush1.bf16.msra.mxu0 0
    %229 = vmatprep.subr.bf16.mxu0 0
    %230 = vmatpush1.bf16.msra.mxu0 0
    %231 = vmatprep.subr.bf16.mxu0 0
    %232 = vmatpush1.bf16.msra.mxu0 0
    %233 = vmatprep.subr.bf16.mxu0 0
    %234 = vmatpush1.bf16.msra.mxu0 0
    %235 = vmatprep.subr.bf16.mxu0 0
    %236 = vmatpush1.bf16.msra.mxu0 0
    %237 = vmatprep.subr.bf16.mxu0 0
    %238 = vmatpush1.bf16.msra.mxu0 0
    %239 = vmatprep.subr.bf16.mxu0 0
    %240 = vmatpush1.bf16.msra.mxu0 0
    %241 = vmatprep.subr.bf16.mxu0 0
    %242 = vmatpush1.bf16.msra.mxu0 0
    %243 = vmatprep.subr.bf16.mxu0 0
    %244 = vmatpush1.bf16.msra.mxu0 0
    %245 = vmatprep.subr.bf16.mxu0 0
    %246 = vmatpush1.bf16.msra.mxu0 0
    %247 = vmatprep.subr.bf16.mxu0 0
    %248 = vmatpush1.bf16.msra.mxu0 0
    %249 = vmatprep.mubr.bf16.mxu0 0
    %250 = vmatmul.mubr.bf16.gmra.mrb[0].mxu0 %v165
    %v251 = vpop.f32.mrb[0].mxu0
    %v252 = vadd.f32 %v142, %v251
    %v253 = vpop.f32.mrb[0].mxu0
    %v254 = vpop.f32.mrb[0].mxu0
    %v255 = vpop.f32.mrb[0].mxu0
    %256 = vdwg.mxu0
    %v257 = vld [vmem:[%s2] sm:$0xff]
    %s258 = scalar_lea.vmem %s0, 8
    %v259 = vld [vmem:[%s258] sm:$0xf]
    %v261 = vcombine.high %v257, %v257
    %v263 = vunpack.c.l.s4 1983009808
    %v264 = vunpack.c.0.s8 %v263
    %v265 = vlaneseq
    %v266 = vshrl.u32 %v265, 7
    %v267 = vsub.s32 %v264, %v266
    %v268 = vrot.slane %v257, %v267
    %v270 = vunpack.c.l.s4 1983009808
    %v271 = vunpack.c.0.s8 %v270
    %v272 = vlaneseq
    %v273 = vshrl.u32 %v272, 7
    %v274 = vsub.s32 %v271, %v273
    %v275 = vrot.slane %v261, %v274
    %v276 = vcombine.high %v268, %v268
    %v277 = vcombine.high %v275, %v275
    %278 = vrot.lane.b32.xlu0 %v268, 126
    %v279 = vpop.permute.xlu0 %278
    %280 = vrot.lane.b32.xlu0 %v276, 126
    %v281 = vpop.permute.xlu0 %280
    %282 = vrot.lane.b32.xlu0 %v275, 126
    %v283 = vpop.permute.xlu0 %282
    %284 = vrot.lane.b32.xlu0 %v277, 126
    %v285 = vpop.permute.xlu0 %284
    %vm286 = vcmask 1031168
    %v287 = vsel %vm286, %v279, %v281
    %v288 = vsel %vm286, %v281, %v283
    %v289 = vsel %vm286, %v283, %v285
    %v291 = vsel %vm52, %v259, 0
    %v294 = vsel %vm56, %v287, 0
    %v297 = vsel %vm56, %v288, 0
    %v300 = vsel %vm56, %v289, 0
    %302 = vmatprep.subr.bf16.mxu0 %v297
    %303 = vmatpush1.bf16.msra.mxu0 %v294
    %304 = vmatprep.subr.bf16.mxu0 0
    %305 = vmatpush1.bf16.msra.mxu0 0
    %306 = vmatprep.subr.bf16.mxu0 0
    %307 = vmatpush1.bf16.msra.mxu0 0
    %308 = vmatprep.subr.bf16.mxu0 0
    %309 = vmatpush1.bf16.msra.mxu0 0
    %310 = vmatprep.subr.bf16.mxu0 0
    %311 = vmatpush1.bf16.msra.mxu0 0
    %312 = vmatprep.subr.bf16.mxu0 0
    %313 = vmatpush1.bf16.msra.mxu0 0
    %314 = vmatprep.subr.bf16.mxu0 0
    %315 = vmatpush1.bf16.msra.mxu0 0
    %316 = vmatprep.subr.bf16.mxu0 0
    %317 = vmatpush1.bf16.msra.mxu0 0
    %318 = vmatprep.subr.bf16.mxu0 0
    %319 = vmatpush1.bf16.msra.mxu0 0
    %320 = vmatprep.subr.bf16.mxu0 0
    %321 = vmatpush1.bf16.msra.mxu0 0
    %322 = vmatprep.subr.bf16.mxu0 0
    %323 = vmatpush1.bf16.msra.mxu0 0
    %324 = vmatprep.subr.bf16.mxu0 0
    %325 = vmatpush1.bf16.msra.mxu0 0
    %326 = vmatprep.subr.bf16.mxu0 0
    %327 = vmatpush1.bf16.msra.mxu0 0
    %328 = vmatprep.subr.bf16.mxu0 0
    %329 = vmatpush1.bf16.msra.mxu0 0
    %330 = vmatprep.subr.bf16.mxu0 0
    %331 = vmatpush1.bf16.msra.mxu0 0
    %332 = vmatprep.subr.bf16.mxu0 0
    %333 = vmatpush1.bf16.msra.mxu0 0
    %334 = vmatprep.mubr.bf16.mxu0 0
    %335 = vmatmul.mubr.bf16.gmra.mrb[0].mxu0 %v291
    %v336 = vpop.f32.mrb[0].mxu0
    %v337 = vadd.f32 0.0, %v336
    %v338 = vpop.f32.mrb[0].mxu0
    %v339 = vadd.f32 0.0, %v338
    %v340 = vpop.f32.mrb[0].mxu0
    %v341 = vpop.f32.mrb[0].mxu0
    %342 = vdwg.mxu0
    %343 = vmatprep.subr.bf16.mxu0 0
    %344 = vmatpush1.bf16.msra.mxu0 %v300
    %345 = vmatprep.subr.bf16.mxu0 0
    %346 = vmatpush1.bf16.msra.mxu0 0
    %347 = vmatprep.subr.bf16.mxu0 0
    %348 = vmatpush1.bf16.msra.mxu0 0
    %349 = vmatprep.subr.bf16.mxu0 0
    %350 = vmatpush1.bf16.msra.mxu0 0
    %351 = vmatprep.subr.bf16.mxu0 0
    %352 = vmatpush1.bf16.msra.mxu0 0
    %353 = vmatprep.subr.bf16.mxu0 0
    %354 = vmatpush1.bf16.msra.mxu0 0
    %355 = vmatprep.subr.bf16.mxu0 0
    %356 = vmatpush1.bf16.msra.mxu0 0
    %357 = vmatprep.subr.bf16.mxu0 0
    %358 = vmatpush1.bf16.msra.mxu0 0
    %359 = vmatprep.subr.bf16.mxu0 0
    %360 = vmatpush1.bf16.msra.mxu0 0
    %361 = vmatprep.subr.bf16.mxu0 0
    %362 = vmatpush1.bf16.msra.mxu0 0
    %363 = vmatprep.subr.bf16.mxu0 0
    %364 = vmatpush1.bf16.msra.mxu0 0
    %365 = vmatprep.subr.bf16.mxu0 0
    %366 = vmatpush1.bf16.msra.mxu0 0
    %367 = vmatprep.subr.bf16.mxu0 0
    %368 = vmatpush1.bf16.msra.mxu0 0
    %369 = vmatprep.subr.bf16.mxu0 0
    %370 = vmatpush1.bf16.msra.mxu0 0
    %371 = vmatprep.subr.bf16.mxu0 0
    %372 = vmatpush1.bf16.msra.mxu0 0
    %373 = vmatprep.subr.bf16.mxu0 0
    %374 = vmatpush1.bf16.msra.mxu0 0
    %375 = vmatprep.mubr.bf16.mxu0 0
    %376 = vmatmul.mubr.bf16.gmra.mrb[0].mxu0 %v291
    %v377 = vpop.f32.mrb[0].mxu0
    %v378 = vadd.f32 0.0, %v377
    %v379 = vpop.f32.mrb[0].mxu0
    %v380 = vpop.f32.mrb[0].mxu0
    %v381 = vpop.f32.mrb[0].mxu0
    %382 = vdwg.mxu0
    %v383 = vadd.f32 %v211, %v337
    %v384 = vadd.f32 %v213, %v339
    %v385 = vadd.f32 %v252, %v378
    %v386 = vld [vmem:[%s2] sm:$0xff]
    %s387 = scalar_lea.vmem %s0, 12
    %v388 = vld [vmem:[%s387] sm:$0xf]
    %v390 = vcombine.high %v386, %v386
    %v392 = vunpack.c.l.s4 1983009808
    %v393 = vunpack.c.0.s8 %v392
    %v394 = vlaneseq
    %v395 = vshrl.u32 %v394, 7
    %v396 = vsub.s32 %v393, %v395
    %v397 = vrot.slane %v386, %v396
    %v399 = vunpack.c.l.s4 1983009808
    %v400 = vunpack.c.0.s8 %v399
    %v401 = vlaneseq
    %v402 = vshrl.u32 %v401, 7
    %v403 = vsub.s32 %v400, %v402
    %v404 = vrot.slane %v390, %v403
    %v405 = vcombine.high %v397, %v397
    %v406 = vcombine.high %v404, %v404
    %407 = vrot.lane.b32.xlu0 %v397, 110
    %v408 = vpop.permute.xlu0 %407
    %409 = vrot.lane.b32.xlu0 %v405, 110
    %v410 = vpop.permute.xlu0 %409
    %411 = vrot.lane.b32.xlu0 %v404, 110
    %v412 = vpop.permute.xlu0 %411
    %413 = vrot.lane.b32.xlu0 %v406, 110
    %v414 = vpop.permute.xlu0 %413
    %vm415 = vcmask 900096
    %v416 = vsel %vm415, %v408, %v410
    %v417 = vsel %vm415, %v410, %v412
    %v418 = vsel %vm415, %v412, %v414
    %v420 = vsel %vm52, %v388, 0
    %v423 = vsel %vm56, %v416, 0
    %v426 = vsel %vm56, %v417, 0
    %v429 = vsel %vm56, %v418, 0
    %431 = vmatprep.subr.bf16.mxu0 %v426
    %432 = vmatpush1.bf16.msra.mxu0 %v423
    %433 = vmatprep.subr.bf16.mxu0 0
    %434 = vmatpush1.bf16.msra.mxu0 0
    %435 = vmatprep.subr.bf16.mxu0 0
    %436 = vmatpush1.bf16.msra.mxu0 0
    %437 = vmatprep.subr.bf16.mxu0 0
    %438 = vmatpush1.bf16.msra.mxu0 0
    %439 = vmatprep.subr.bf16.mxu0 0
    %440 = vmatpush1.bf16.msra.mxu0 0
    %441 = vmatprep.subr.bf16.mxu0 0
    %442 = vmatpush1.bf16.msra.mxu0 0
    %443 = vmatprep.subr.bf16.mxu0 0
    %444 = vmatpush1.bf16.msra.mxu0 0
    %445 = vmatprep.subr.bf16.mxu0 0
    %446 = vmatpush1.bf16.msra.mxu0 0
    %447 = vmatprep.subr.bf16.mxu0 0
    %448 = vmatpush1.bf16.msra.mxu0 0
    %449 = vmatprep.subr.bf16.mxu0 0
    %450 = vmatpush1.bf16.msra.mxu0 0
    %451 = vmatprep.subr.bf16.mxu0 0
    %452 = vmatpush1.bf16.msra.mxu0 0
    %453 = vmatprep.subr.bf16.mxu0 0
    %454 = vmatpush1.bf16.msra.mxu0 0
    %455 = vmatprep.subr.bf16.mxu0 0
    %456 = vmatpush1.bf16.msra.mxu0 0
    %457 = vmatprep.subr.bf16.mxu0 0
    %458 = vmatpush1.bf16.msra.mxu0 0
    %459 = vmatprep.subr.bf16.mxu0 0
    %460 = vmatpush1.bf16.msra.mxu0 0
    %461 = vmatprep.subr.bf16.mxu0 0
    %462 = vmatpush1.bf16.msra.mxu0 0
    %463 = vmatprep.mubr.bf16.mxu0 0
    %464 = vmatmul.mubr.bf16.gmra.mrb[0].mxu0 %v420
    %v465 = vpop.f32.mrb[0].mxu0
    %v466 = vadd.f32 0.0, %v465
    %v467 = vpop.f32.mrb[0].mxu0
    %v468 = vadd.f32 0.0, %v467
    %v469 = vpop.f32.mrb[0].mxu0
    %v470 = vpop.f32.mrb[0].mxu0
    %471 = vdwg.mxu0
    %472 = vmatprep.subr.bf16.mxu0 0
    %473 = vmatpush1.bf16.msra.mxu0 %v429
    %474 = vmatprep.subr.bf16.mxu0 0
    %475 = vmatpush1.bf16.msra.mxu0 0
    %476 = vmatprep.subr.bf16.mxu0 0
    %477 = vmatpush1.bf16.msra.mxu0 0
    %478 = vmatprep.subr.bf16.mxu0 0
    %479 = vmatpush1.bf16.msra.mxu0 0
    %480 = vmatprep.subr.bf16.mxu0 0
    %481 = vmatpush1.bf16.msra.mxu0 0
    %482 = vmatprep.subr.bf16.mxu0 0
    %483 = vmatpush1.bf16.msra.mxu0 0
    %484 = vmatprep.subr.bf16.mxu0 0
    %485 = vmatpush1.bf16.msra.mxu0 0
    %486 = vmatprep.subr.bf16.mxu0 0
    %487 = vmatpush1.bf16.msra.mxu0 0
    %488 = vmatprep.subr.bf16.mxu0 0
    %489 = vmatpush1.bf16.msra.mxu0 0
    %490 = vmatprep.subr.bf16.mxu0 0
    %491 = vmatpush1.bf16.msra.mxu0 0
    %492 = vmatprep.subr.bf16.mxu0 0
    %493 = vmatpush1.bf16.msra.mxu0 0
    %494 = vmatprep.subr.bf16.mxu0 0
    %495 = vmatpush1.bf16.msra.mxu0 0
    %496 = vmatprep.subr.bf16.mxu0 0
    %497 = vmatpush1.bf16.msra.mxu0 0
    %498 = vmatprep.subr.bf16.mxu0 0
    %499 = vmatpush1.bf16.msra.mxu0 0
    %500 = vmatprep.subr.bf16.mxu0 0
    %501 = vmatpush1.bf16.msra.mxu0 0
    %502 = vmatprep.subr.bf16.mxu0 0
    %503 = vmatpush1.bf16.msra.mxu0 0
    %504 = vmatprep.mubr.bf16.mxu0 0
    %505 = vmatmul.mubr.bf16.gmra.mrb[0].mxu0 %v420
    %v506 = vpop.f32.mrb[0].mxu0
    %v507 = vadd.f32 0.0, %v506
    %v508 = vpop.f32.mrb[0].mxu0
    %v509 = vpop.f32.mrb[0].mxu0
    %v510 = vpop.f32.mrb[0].mxu0
    %511 = vdwg.mxu0
    %v512 = vadd.f32 %v383, %v466
    %v513 = vadd.f32 %v384, %v468
    %v514 = vadd.f32 %v385, %v507
    %v515 = vld [vmem:[%s2] sm:$0xff]
    %s516 = scalar_lea.vmem %s0, 16
    %v517 = vld [vmem:[%s516] sm:$0xf]
    %v519 = vcombine.high %v515, %v515
    %v521 = vunpack.c.l.s4 1983009808
    %v522 = vunpack.c.0.s8 %v521
    %v523 = vlaneseq
    %v524 = vshrl.u32 %v523, 7
    %v525 = vsub.s32 %v522, %v524
    %v526 = vrot.slane %v515, %v525
    %v528 = vunpack.c.l.s4 1983009808
    %v529 = vunpack.c.0.s8 %v528
    %v530 = vlaneseq
    %v531 = vshrl.u32 %v530, 7
    %v532 = vsub.s32 %v529, %v531
    %v533 = vrot.slane %v519, %v532
    %v534 = vcombine.high %v526, %v526
    %v535 = vcombine.high %v533, %v533
    %536 = vrot.lane.b32.xlu0 %v526, 109
    %v537 = vpop.permute.xlu0 %536
    %538 = vrot.lane.b32.xlu0 %v534, 109
    %v539 = vpop.permute.xlu0 %538
    %540 = vrot.lane.b32.xlu0 %v533, 109
    %v541 = vpop.permute.xlu0 %540
    %542 = vrot.lane.b32.xlu0 %v535, 109
    %v543 = vpop.permute.xlu0 %542
    %vm544 = vcmask 891904
    %v545 = vsel %vm544, %v537, %v539
    %v546 = vsel %vm544, %v539, %v541
    %v547 = vsel %vm544, %v541, %v543
    %v549 = vsel %vm52, %v517, 0
    %v552 = vsel %vm56, %v545, 0
    %v555 = vsel %vm56, %v546, 0
    %v558 = vsel %vm56, %v547, 0
    %560 = vmatprep.subr.bf16.mxu0 %v555
    %561 = vmatpush1.bf16.msra.mxu0 %v552
    %562 = vmatprep.subr.bf16.mxu0 0
    %563 = vmatpush1.bf16.msra.mxu0 0
    %564 = vmatprep.subr.bf16.mxu0 0
    %565 = vmatpush1.bf16.msra.mxu0 0
    %566 = vmatprep.subr.bf16.mxu0 0
    %567 = vmatpush1.bf16.msra.mxu0 0
    %568 = vmatprep.subr.bf16.mxu0 0
    %569 = vmatpush1.bf16.msra.mxu0 0
    %570 = vmatprep.subr.bf16.mxu0 0
    %571 = vmatpush1.bf16.msra.mxu0 0
    %572 = vmatprep.subr.bf16.mxu0 0
    %573 = vmatpush1.bf16.msra.mxu0 0
    %574 = vmatprep.subr.bf16.mxu0 0
    %575 = vmatpush1.bf16.msra.mxu0 0
    %576 = vmatprep.subr.bf16.mxu0 0
    %577 = vmatpush1.bf16.msra.mxu0 0
    %578 = vmatprep.subr.bf16.mxu0 0
    %579 = vmatpush1.bf16.msra.mxu0 0
    %580 = vmatprep.subr.bf16.mxu0 0
    %581 = vmatpush1.bf16.msra.mxu0 0
    %582 = vmatprep.subr.bf16.mxu0 0
    %583 = vmatpush1.bf16.msra.mxu0 0
    %584 = vmatprep.subr.bf16.mxu0 0
    %585 = vmatpush1.bf16.msra.mxu0 0
    %586 = vmatprep.subr.bf16.mxu0 0
    %587 = vmatpush1.bf16.msra.mxu0 0
    %588 = vmatprep.subr.bf16.mxu0 0
    %589 = vmatpush1.bf16.msra.mxu0 0
    %590 = vmatprep.subr.bf16.mxu0 0
    %591 = vmatpush1.bf16.msra.mxu0 0
    %592 = vmatprep.mubr.bf16.mxu0 0
    %593 = vmatmul.mubr.bf16.gmra.mrb[0].mxu0 %v549
    %v594 = vpop.f32.mrb[0].mxu0
    %v595 = vadd.f32 0.0, %v594
    %v596 = vpop.f32.mrb[0].mxu0
    %v597 = vadd.f32 0.0, %v596
    %v598 = vpop.f32.mrb[0].mxu0
    %v599 = vpop.f32.mrb[0].mxu0
    %600 = vdwg.mxu0
    %601 = vmatprep.subr.bf16.mxu0 0
    %602 = vmatpush1.bf16.msra.mxu0 %v558
    %603 = vmatprep.subr.bf16.mxu0 0
    %604 = vmatpush1.bf16.msra.mxu0 0
    %605 = vmatprep.subr.bf16.mxu0 0
    %606 = vmatpush1.bf16.msra.mxu0 0
    %607 = vmatprep.subr.bf16.mxu0 0
    %608 = vmatpush1.bf16.msra.mxu0 0
    %609 = vmatprep.subr.bf16.mxu0 0
    %610 = vmatpush1.bf16.msra.mxu0 0
    %611 = vmatprep.subr.bf16.mxu0 0
    %612 = vmatpush1.bf16.msra.mxu0 0
    %613 = vmatprep.subr.bf16.mxu0 0
    %614 = vmatpush1.bf16.msra.mxu0 0
    %615 = vmatprep.subr.bf16.mxu0 0
    %616 = vmatpush1.bf16.msra.mxu0 0
    %617 = vmatprep.subr.bf16.mxu0 0
    %618 = vmatpush1.bf16.msra.mxu0 0
    %619 = vmatprep.subr.bf16.mxu0 0
    %620 = vmatpush1.bf16.msra.mxu0 0
    %621 = vmatprep.subr.bf16.mxu0 0
    %622 = vmatpush1.bf16.msra.mxu0 0
    %623 = vmatprep.subr.bf16.mxu0 0
    %624 = vmatpush1.bf16.msra.mxu0 0
    %625 = vmatprep.subr.bf16.mxu0 0
    %626 = vmatpush1.bf16.msra.mxu0 0
    %627 = vmatprep.subr.bf16.mxu0 0
    %628 = vmatpush1.bf16.msra.mxu0 0
    %629 = vmatprep.subr.bf16.mxu0 0
    %630 = vmatpush1.bf16.msra.mxu0 0
    %631 = vmatprep.subr.bf16.mxu0 0
    %632 = vmatpush1.bf16.msra.mxu0 0
    %633 = vmatprep.mubr.bf16.mxu0 0
    %634 = vmatmul.mubr.bf16.gmra.mrb[0].mxu0 %v549
    %v635 = vpop.f32.mrb[0].mxu0
    %v636 = vadd.f32 0.0, %v635
    %v637 = vpop.f32.mrb[0].mxu0
    %v638 = vpop.f32.mrb[0].mxu0
    %v639 = vpop.f32.mrb[0].mxu0
    %640 = vdwg.mxu0
    %v641 = vadd.f32 %v512, %v595
    %v642 = vadd.f32 %v513, %v597
    %v643 = vadd.f32 %v514, %v636
    %v644 = vld [vmem:[%s2] sm:$0xff]
    %s645 = scalar_lea.vmem %s0, 20
    %v646 = vld [vmem:[%s645] sm:$0xf]
    %v648 = vcombine.high %v644, %v644
    %v650 = vunpack.c.l.s4 1983009808
    %v651 = vunpack.c.0.s8 %v650
    %v652 = vlaneseq
    %v653 = vshrl.u32 %v652, 7
    %v654 = vsub.s32 %v651, %v653
    %v655 = vrot.slane %v644, %v654
    %v657 = vunpack.c.l.s4 1983009808
    %v658 = vunpack.c.0.s8 %v657
    %v659 = vlaneseq
    %v660 = vshrl.u32 %v659, 7
    %v661 = vsub.s32 %v658, %v660
    %v662 = vrot.slane %v648, %v661
    %v663 = vcombine.high %v655, %v655
    %v664 = vcombine.high %v662, %v662
    %665 = vrot.lane.b32.xlu0 %v655, 108
    %v666 = vpop.permute.xlu0 %665
    %667 = vrot.lane.b32.xlu0 %v663, 108
    %v668 = vpop.permute.xlu0 %667
    %669 = vrot.lane.b32.xlu0 %v662, 108
    %v670 = vpop.permute.xlu0 %669
    %671 = vrot.lane.b32.xlu0 %v664, 108
    %v672 = vpop.permute.xlu0 %671
    %vm673 = vcmask 883712
    %v674 = vsel %vm673, %v666, %v668
    %v675 = vsel %vm673, %v668, %v670
    %v676 = vsel %vm673, %v670, %v672
    %v678 = vsel %vm52, %v646, 0
    %v681 = vsel %vm56, %v674, 0
    %v684 = vsel %vm56, %v675, 0
    %v687 = vsel %vm56, %v676, 0
    %689 = vmatprep.subr.bf16.mxu0 %v684
    %690 = vmatpush1.bf16.msra.mxu0 %v681
    %691 = vmatprep.subr.bf16.mxu0 0
    %692 = vmatpush1.bf16.msra.mxu0 0
    %693 = vmatprep.subr.bf16.mxu0 0
    %694 = vmatpush1.bf16.msra.mxu0 0
    %695 = vmatprep.subr.bf16.mxu0 0
    %696 = vmatpush1.bf16.msra.mxu0 0
    %697 = vmatprep.subr.bf16.mxu0 0
    %698 = vmatpush1.bf16.msra.mxu0 0
    %699 = vmatprep.subr.bf16.mxu0 0
    %700 = vmatpush1.bf16.msra.mxu0 0
    %701 = vmatprep.subr.bf16.mxu0 0
    %702 = vmatpush1.bf16.msra.mxu0 0
    %703 = vmatprep.subr.bf16.mxu0 0
    %704 = vmatpush1.bf16.msra.mxu0 0
    %705 = vmatprep.subr.bf16.mxu0 0
    %706 = vmatpush1.bf16.msra.mxu0 0
    %707 = vmatprep.subr.bf16.mxu0 0
    %708 = vmatpush1.bf16.msra.mxu0 0
    %709 = vmatprep.subr.bf16.mxu0 0
    %710 = vmatpush1.bf16.msra.mxu0 0
    %711 = vmatprep.subr.bf16.mxu0 0
    %712 = vmatpush1.bf16.msra.mxu0 0
    %713 = vmatprep.subr.bf16.mxu0 0
    %714 = vmatpush1.bf16.msra.mxu0 0
    %715 = vmatprep.subr.bf16.mxu0 0
    %716 = vmatpush1.bf16.msra.mxu0 0
    %717 = vmatprep.subr.bf16.mxu0 0
    %718 = vmatpush1.bf16.msra.mxu0 0
    %719 = vmatprep.subr.bf16.mxu0 0
    %720 = vmatpush1.bf16.msra.mxu0 0
    %721 = vmatprep.mubr.bf16.mxu0 0
    %722 = vmatmul.mubr.bf16.gmra.mrb[0].mxu0 %v678
    %v723 = vpop.f32.mrb[0].mxu0
    %v724 = vadd.f32 0.0, %v723
    %v725 = vpop.f32.mrb[0].mxu0
    %v726 = vadd.f32 0.0, %v725
    %v727 = vpop.f32.mrb[0].mxu0
    %v728 = vpop.f32.mrb[0].mxu0
    %729 = vdwg.mxu0
    %730 = vmatprep.subr.bf16.mxu0 0
    %731 = vmatpush1.bf16.msra.mxu0 %v687
    %732 = vmatprep.subr.bf16.mxu0 0
    %733 = vmatpush1.bf16.msra.mxu0 0
    %734 = vmatprep.subr.bf16.mxu0 0
    %735 = vmatpush1.bf16.msra.mxu0 0
    %736 = vmatprep.subr.bf16.mxu0 0
    %737 = vmatpush1.bf16.msra.mxu0 0
    %738 = vmatprep.subr.bf16.mxu0 0
    %739 = vmatpush1.bf16.msra.mxu0 0
    %740 = vmatprep.subr.bf16.mxu0 0
    %741 = vmatpush1.bf16.msra.mxu0 0
    %742 = vmatprep.subr.bf16.mxu0 0
    %743 = vmatpush1.bf16.msra.mxu0 0
    %744 = vmatprep.subr.bf16.mxu0 0
    %745 = vmatpush1.bf16.msra.mxu0 0
    %746 = vmatprep.subr.bf16.mxu0 0
    %747 = vmatpush1.bf16.msra.mxu0 0
    %748 = vmatprep.subr.bf16.mxu0 0
    %749 = vmatpush1.bf16.msra.mxu0 0
    %750 = vmatprep.subr.bf16.mxu0 0
    %751 = vmatpush1.bf16.msra.mxu0 0
    %752 = vmatprep.subr.bf16.mxu0 0
    %753 = vmatpush1.bf16.msra.mxu0 0
    %754 = vmatprep.subr.bf16.mxu0 0
    %755 = vmatpush1.bf16.msra.mxu0 0
    %756 = vmatprep.subr.bf16.mxu0 0
    %757 = vmatpush1.bf16.msra.mxu0 0
    %758 = vmatprep.subr.bf16.mxu0 0
    %759 = vmatpush1.bf16.msra.mxu0 0
    %760 = vmatprep.subr.bf16.mxu0 0
    %761 = vmatpush1.bf16.msra.mxu0 0
    %762 = vmatprep.mubr.bf16.mxu0 0
    %763 = vmatmul.mubr.bf16.gmra.mrb[0].mxu0 %v678
    %v764 = vpop.f32.mrb[0].mxu0
    %v765 = vadd.f32 0.0, %v764
    %v766 = vpop.f32.mrb[0].mxu0
    %v767 = vpop.f32.mrb[0].mxu0
    %v768 = vpop.f32.mrb[0].mxu0
    %769 = vdwg.mxu0
    %v770 = vadd.f32 %v641, %v724
    %v771 = vadd.f32 %v642, %v726
    %v772 = vadd.f32 %v643, %v765
    %v773 = vld [vmem:[%s2] sm:$0xff]
    %s774 = scalar_lea.vmem %s0, 24
    %v775 = vld [vmem:[%s774] sm:$0xf]
    %v777 = vcombine.high %v773, %v773
    %v779 = vunpack.c.l.s4 1983009808
    %v780 = vunpack.c.0.s8 %v779
    %v781 = vlaneseq
    %v782 = vshrl.u32 %v781, 7
    %v783 = vsub.s32 %v780, %v782
    %v784 = vrot.slane %v773, %v783
    %v786 = vunpack.c.l.s4 1983009808
    %v787 = vunpack.c.0.s8 %v786
    %v788 = vlaneseq
    %v789 = vshrl.u32 %v788, 7
    %v790 = vsub.s32 %v787, %v789
    %v791 = vrot.slane %v777, %v790
    %v792 = vcombine.high %v784, %v784
    %v793 = vcombine.high %v791, %v791
    %794 = vrot.lane.b32.xlu0 %v784, 92
    %v795 = vpop.permute.xlu0 %794
    %796 = vrot.lane.b32.xlu0 %v792, 92
    %v797 = vpop.permute.xlu0 %796
    %798 = vrot.lane.b32.xlu0 %v791, 92
    %v799 = vpop.permute.xlu0 %798
    %800 = vrot.lane.b32.xlu0 %v793, 92
    %v801 = vpop.permute.xlu0 %800
    %vm802 = vcmask 752640
    %v803 = vsel %vm802, %v795, %v797
    %v804 = vsel %vm802, %v797, %v799
    %v805 = vsel %vm802, %v799, %v801
    %v807 = vsel %vm52, %v775, 0
    %v810 = vsel %vm56, %v803, 0
    %v813 = vsel %vm56, %v804, 0
    %v816 = vsel %vm56, %v805, 0
    %818 = vmatprep.subr.bf16.mxu0 %v813
    %819 = vmatpush1.bf16.msra.mxu0 %v810
    %820 = vmatprep.subr.bf16.mxu0 0
    %821 = vmatpush1.bf16.msra.mxu0 0
    %822 = vmatprep.subr.bf16.mxu0 0
    %823 = vmatpush1.bf16.msra.mxu0 0
    %824 = vmatprep.subr.bf16.mxu0 0
    %825 = vmatpush1.bf16.msra.mxu0 0
    %826 = vmatprep.subr.bf16.mxu0 0
    %827 = vmatpush1.bf16.msra.mxu0 0
    %828 = vmatprep.subr.bf16.mxu0 0
    %829 = vmatpush1.bf16.msra.mxu0 0
    %830 = vmatprep.subr.bf16.mxu0 0
    %831 = vmatpush1.bf16.msra.mxu0 0
    %832 = vmatprep.subr.bf16.mxu0 0
    %833 = vmatpush1.bf16.msra.mxu0 0
    %834 = vmatprep.subr.bf16.mxu0 0
    %835 = vmatpush1.bf16.msra.mxu0 0
    %836 = vmatprep.subr.bf16.mxu0 0
    %837 = vmatpush1.bf16.msra.mxu0 0
    %838 = vmatprep.subr.bf16.mxu0 0
    %839 = vmatpush1.bf16.msra.mxu0 0
    %840 = vmatprep.subr.bf16.mxu0 0
    %841 = vmatpush1.bf16.msra.mxu0 0
    %842 = vmatprep.subr.bf16.mxu0 0
    %843 = vmatpush1.bf16.msra.mxu0 0
    %844 = vmatprep.subr.bf16.mxu0 0
    %845 = vmatpush1.bf16.msra.mxu0 0
    %846 = vmatprep.subr.bf16.mxu0 0
    %847 = vmatpush1.bf16.msra.mxu0 0
    %848 = vmatprep.subr.bf16.mxu0 0
    %849 = vmatpush1.bf16.msra.mxu0 0
    %850 = vmatprep.mubr.bf16.mxu0 0
    %851 = vmatmul.mubr.bf16.gmra.mrb[0].mxu0 %v807
    %v852 = vpop.f32.mrb[0].mxu0
    %v853 = vadd.f32 0.0, %v852
    %v854 = vpop.f32.mrb[0].mxu0
    %v855 = vadd.f32 0.0, %v854
    %v856 = vpop.f32.mrb[0].mxu0
    %v857 = vpop.f32.mrb[0].mxu0
    %858 = vdwg.mxu0
    %859 = vmatprep.subr.bf16.mxu0 0
    %860 = vmatpush1.bf16.msra.mxu0 %v816
    %861 = vmatprep.subr.bf16.mxu0 0
    %862 = vmatpush1.bf16.msra.mxu0 0
    %863 = vmatprep.subr.bf16.mxu0 0
    %864 = vmatpush1.bf16.msra.mxu0 0
    %865 = vmatprep.subr.bf16.mxu0 0
    %866 = vmatpush1.bf16.msra.mxu0 0
    %867 = vmatprep.subr.bf16.mxu0 0
    %868 = vmatpush1.bf16.msra.mxu0 0
    %869 = vmatprep.subr.bf16.mxu0 0
    %870 = vmatpush1.bf16.msra.mxu0 0
    %871 = vmatprep.subr.bf16.mxu0 0
    %872 = vmatpush1.bf16.msra.mxu0 0
    %873 = vmatprep.subr.bf16.mxu0 0
    %874 = vmatpush1.bf16.msra.mxu0 0
    %875 = vmatprep.subr.bf16.mxu0 0
    %876 = vmatpush1.bf16.msra.mxu0 0
    %877 = vmatprep.subr.bf16.mxu0 0
    %878 = vmatpush1.bf16.msra.mxu0 0
    %879 = vmatprep.subr.bf16.mxu0 0
    %880 = vmatpush1.bf16.msra.mxu0 0
    %881 = vmatprep.subr.bf16.mxu0 0
    %882 = vmatpush1.bf16.msra.mxu0 0
    %883 = vmatprep.subr.bf16.mxu0 0
    %884 = vmatpush1.bf16.msra.mxu0 0
    %885 = vmatprep.subr.bf16.mxu0 0
    %886 = vmatpush1.bf16.msra.mxu0 0
    %887 = vmatprep.subr.bf16.mxu0 0
    %888 = vmatpush1.bf16.msra.mxu0 0
    %889 = vmatprep.subr.bf16.mxu0 0
    %890 = vmatpush1.bf16.msra.mxu0 0
    %891 = vmatprep.mubr.bf16.mxu0 0
    %892 = vmatmul.mubr.bf16.gmra.mrb[0].mxu0 %v807
    %v893 = vpop.f32.mrb[0].mxu0
    %v894 = vadd.f32 0.0, %v893
    %v895 = vpop.f32.mrb[0].mxu0
    %v896 = vpop.f32.mrb[0].mxu0
    %v897 = vpop.f32.mrb[0].mxu0
    %898 = vdwg.mxu0
    %v899 = vadd.f32 %v770, %v853
    %v900 = vadd.f32 %v771, %v855
    %v901 = vadd.f32 %v772, %v894
    %v902 = vld [vmem:[%s2] sm:$0xff]
    %s903 = scalar_lea.vmem %s0, 28
    %v904 = vld [vmem:[%s903] sm:$0xf]
    %v906 = vcombine.high %v902, %v902
    %v908 = vunpack.c.l.s4 1983009808
    %v909 = vunpack.c.0.s8 %v908
    %v910 = vlaneseq
    %v911 = vshrl.u32 %v910, 7
    %v912 = vsub.s32 %v909, %v911
    %v913 = vrot.slane %v902, %v912
    %v915 = vunpack.c.l.s4 1983009808
    %v916 = vunpack.c.0.s8 %v915
    %v917 = vlaneseq
    %v918 = vshrl.u32 %v917, 7
    %v919 = vsub.s32 %v916, %v918
    %v920 = vrot.slane %v906, %v919
    %v921 = vcombine.high %v913, %v913
    %v922 = vcombine.high %v920, %v920
    %923 = vrot.lane.b32.xlu0 %v913, 91
    %v924 = vpop.permute.xlu0 %923
    %925 = vrot.lane.b32.xlu0 %v921, 91
    %v926 = vpop.permute.xlu0 %925
    %927 = vrot.lane.b32.xlu0 %v920, 91
    %v928 = vpop.permute.xlu0 %927
    %929 = vrot.lane.b32.xlu0 %v922, 91
    %v930 = vpop.permute.xlu0 %929
    %vm931 = vcmask 744448
    %v932 = vsel %vm931, %v924, %v926
    %v933 = vsel %vm931, %v926, %v928
    %v934 = vsel %vm931, %v928, %v930
    %v936 = vsel %vm52, %v904, 0
    %v939 = vsel %vm56, %v932, 0
    %v942 = vsel %vm56, %v933, 0
    %v945 = vsel %vm56, %v934, 0
    %947 = vmatprep.subr.bf16.mxu0 %v942
    %948 = vmatpush1.bf16.msra.mxu0 %v939
    %949 = vmatprep.subr.bf16.mxu0 0
    %950 = vmatpush1.bf16.msra.mxu0 0
    %951 = vmatprep.subr.bf16.mxu0 0
    %952 = vmatpush1.bf16.msra.mxu0 0
    %953 = vmatprep.subr.bf16.mxu0 0
    %954 = vmatpush1.bf16.msra.mxu0 0
    %955 = vmatprep.subr.bf16.mxu0 0
    %956 = vmatpush1.bf16.msra.mxu0 0
    %957 = vmatprep.subr.bf16.mxu0 0
    %958 = vmatpush1.bf16.msra.mxu0 0
    %959 = vmatprep.subr.bf16.mxu0 0
    %960 = vmatpush1.bf16.msra.mxu0 0
    %961 = vmatprep.subr.bf16.mxu0 0
    %962 = vmatpush1.bf16.msra.mxu0 0
    %963 = vmatprep.subr.bf16.mxu0 0
    %964 = vmatpush1.bf16.msra.mxu0 0
    %965 = vmatprep.subr.bf16.mxu0 0
    %966 = vmatpush1.bf16.msra.mxu0 0
    %967 = vmatprep.subr.bf16.mxu0 0
    %968 = vmatpush1.bf16.msra.mxu0 0
    %969 = vmatprep.subr.bf16.mxu0 0
    %970 = vmatpush1.bf16.msra.mxu0 0
    %971 = vmatprep.subr.bf16.mxu0 0
    %972 = vmatpush1.bf16.msra.mxu0 0
    %973 = vmatprep.subr.bf16.mxu0 0
    %974 = vmatpush1.bf16.msra.mxu0 0
    %975 = vmatprep.subr.bf16.mxu0 0
    %976 = vmatpush1.bf16.msra.mxu0 0
    %977 = vmatprep.subr.bf16.mxu0 0
    %978 = vmatpush1.bf16.msra.mxu0 0
    %979 = vmatprep.mubr.bf16.mxu0 0
    %980 = vmatmul.mubr.bf16.gmra.mrb[0].mxu0 %v936
    %v981 = vpop.f32.mrb[0].mxu0
    %v982 = vadd.f32 0.0, %v981
    %v983 = vpop.f32.mrb[0].mxu0
    %v984 = vadd.f32 0.0, %v983
    %v985 = vpop.f32.mrb[0].mxu0
    %v986 = vpop.f32.mrb[0].mxu0
    %987 = vdwg.mxu0
    %988 = vmatprep.subr.bf16.mxu0 0
    %989 = vmatpush1.bf16.msra.mxu0 %v945
    %990 = vmatprep.subr.bf16.mxu0 0
    %991 = vmatpush1.bf16.msra.mxu0 0
    %992 = vmatprep.subr.bf16.mxu0 0
    %993 = vmatpush1.bf16.msra.mxu0 0
    %994 = vmatprep.subr.bf16.mxu0 0
    %995 = vmatpush1.bf16.msra.mxu0 0
    %996 = vmatprep.subr.bf16.mxu0 0
    %997 = vmatpush1.bf16.msra.mxu0 0
    %998 = vmatprep.subr.bf16.mxu0 0
    %999 = vmatpush1.bf16.msra.mxu0 0
    %1000 = vmatprep.subr.bf16.mxu0 0
    %1001 = vmatpush1.bf16.msra.mxu0 0
    %1002 = vmatprep.subr.bf16.mxu0 0
    %1003 = vmatpush1.bf16.msra.mxu0 0
    %1004 = vmatprep.subr.bf16.mxu0 0
    %1005 = vmatpush1.bf16.msra.mxu0 0
    %1006 = vmatprep.subr.bf16.mxu0 0
    %1007 = vmatpush1.bf16.msra.mxu0 0
    %1008 = vmatprep.subr.bf16.mxu0 0
    %1009 = vmatpush1.bf16.msra.mxu0 0
    %1010 = vmatprep.subr.bf16.mxu0 0
    %1011 = vmatpush1.bf16.msra.mxu0 0
    %1012 = vmatprep.subr.bf16.mxu0 0
    %1013 = vmatpush1.bf16.msra.mxu0 0
    %1014 = vmatprep.subr.bf16.mxu0 0
    %1015 = vmatpush1.bf16.msra.mxu0 0
    %1016 = vmatprep.subr.bf16.mxu0 0
    %1017 = vmatpush1.bf16.msra.mxu0 0
    %1018 = vmatprep.subr.bf16.mxu0 0
    %1019 = vmatpush1.bf16.msra.mxu0 0
    %1020 = vmatprep.mubr.bf16.mxu0 0
    %1021 = vmatmul.mubr.bf16.gmra.mrb[0].mxu0 %v936
    %v1022 = vpop.f32.mrb[0].mxu0
    %v1023 = vadd.f32 0.0, %v1022
    %v1024 = vpop.f32.mrb[0].mxu0
    %v1025 = vpop.f32.mrb[0].mxu0
    %v1026 = vpop.f32.mrb[0].mxu0
    %1027 = vdwg.mxu0
    %v1028 = vadd.f32 %v899, %v982
    %v1029 = vadd.f32 %v900, %v984
    %v1030 = vadd.f32 %v901, %v1023
    %v1031 = vld [vmem:[%s2] sm:$0xff]
    %s1032 = scalar_lea.vmem %s0, 32
    %v1033 = vld [vmem:[%s1032] sm:$0xf]
    %v1035 = vcombine.high %v1031, %v1031
    %v1037 = vunpack.c.l.s4 1983009808
    %v1038 = vunpack.c.0.s8 %v1037
    %v1039 = vlaneseq
    %v1040 = vshrl.u32 %v1039, 7
    %v1041 = vsub.s32 %v1038, %v1040
    %v1042 = vrot.slane %v1031, %v1041
    %v1044 = vunpack.c.l.s4 1983009808
    %v1045 = vunpack.c.0.s8 %v1044
    %v1046 = vlaneseq
    %v1047 = vshrl.u32 %v1046, 7
    %v1048 = vsub.s32 %v1045, %v1047
    %v1049 = vrot.slane %v1035, %v1048
    %v1050 = vcombine.high %v1042, %v1042
    %v1051 = vcombine.high %v1049, %v1049
    %1052 = vrot.lane.b32.xlu0 %v1042, 90
    %v1053 = vpop.permute.xlu0 %1052
    %1054 = vrot.lane.b32.xlu0 %v1050, 90
    %v1055 = vpop.permute.xlu0 %1054
    %1056 = vrot.lane.b32.xlu0 %v1049, 90
    %v1057 = vpop.permute.xlu0 %1056
    %1058 = vrot.lane.b32.xlu0 %v1051, 90
    %v1059 = vpop.permute.xlu0 %1058
    %vm1060 = vcmask 736256
    %v1061 = vsel %vm1060, %v1053, %v1055
    %v1062 = vsel %vm1060, %v1055, %v1057
    %v1063 = vsel %vm1060, %v1057, %v1059
    %v1065 = vsel %vm52, %v1033, 0
    %v1068 = vsel %vm56, %v1061, 0
    %v1071 = vsel %vm56, %v1062, 0
    %v1074 = vsel %vm56, %v1063, 0
    %1076 = vmatprep.subr.bf16.mxu0 %v1071
    %1077 = vmatpush1.bf16.msra.mxu0 %v1068
    %1078 = vmatprep.subr.bf16.mxu0 0
    %1079 = vmatpush1.bf16.msra.mxu0 0
    %1080 = vmatprep.subr.bf16.mxu0 0
    %1081 = vmatpush1.bf16.msra.mxu0 0
    %1082 = vmatprep.subr.bf16.mxu0 0
    %1083 = vmatpush1.bf16.msra.mxu0 0
    %1084 = vmatprep.subr.bf16.mxu0 0
    %1085 = vmatpush1.bf16.msra.mxu0 0
    %1086 = vmatprep.subr.bf16.mxu0 0
    %1087 = vmatpush1.bf16.msra.mxu0 0
    %1088 = vmatprep.subr.bf16.mxu0 0
    %1089 = vmatpush1.bf16.msra.mxu0 0
    %1090 = vmatprep.subr.bf16.mxu0 0
    %1091 = vmatpush1.bf16.msra.mxu0 0
    %1092 = vmatprep.subr.bf16.mxu0 0
    %1093 = vmatpush1.bf16.msra.mxu0 0
    %1094 = vmatprep.subr.bf16.mxu0 0
    %1095 = vmatpush1.bf16.msra.mxu0 0
    %1096 = vmatprep.subr.bf16.mxu0 0
    %1097 = vmatpush1.bf16.msra.mxu0 0
    %1098 = vmatprep.subr.bf16.mxu0 0
    %1099 = vmatpush1.bf16.msra.mxu0 0
    %1100 = vmatprep.subr.bf16.mxu0 0
    %1101 = vmatpush1.bf16.msra.mxu0 0
    %1102 = vmatprep.subr.bf16.mxu0 0
    %1103 = vmatpush1.bf16.msra.mxu0 0
    %1104 = vmatprep.subr.bf16.mxu0 0
    %1105 = vmatpush1.bf16.msra.mxu0 0
    %1106 = vmatprep.subr.bf16.mxu0 0
    %1107 = vmatpush1.bf16.msra.mxu0 0
    %1108 = vmatprep.mubr.bf16.mxu0 0
    %1109 = vmatmul.mubr.bf16.gmra.mrb[0].mxu0 %v1065
    %v1110 = vpop.f32.mrb[0].mxu0
    %v1111 = vadd.f32 0.0, %v1110
    %v1112 = vpop.f32.mrb[0].mxu0
    %v1113 = vadd.f32 0.0, %v1112
    %v1114 = vpop.f32.mrb[0].mxu0
    %v1115 = vpop.f32.mrb[0].mxu0
    %1116 = vdwg.mxu0
    %1117 = vmatprep.subr.bf16.mxu0 0
    %1118 = vmatpush1.bf16.msra.mxu0 %v1074
    %1119 = vmatprep.subr.bf16.mxu0 0
    %1120 = vmatpush1.bf16.msra.mxu0 0
    %1121 = vmatprep.subr.bf16.mxu0 0
    %1122 = vmatpush1.bf16.msra.mxu0 0
    %1123 = vmatprep.subr.bf16.mxu0 0
    %1124 = vmatpush1.bf16.msra.mxu0 0
    %1125 = vmatprep.subr.bf16.mxu0 0
    %1126 = vmatpush1.bf16.msra.mxu0 0
    %1127 = vmatprep.subr.bf16.mxu0 0
    %1128 = vmatpush1.bf16.msra.mxu0 0
    %1129 = vmatprep.subr.bf16.mxu0 0
    %1130 = vmatpush1.bf16.msra.mxu0 0
    %1131 = vmatprep.subr.bf16.mxu0 0
    %1132 = vmatpush1.bf16.msra.mxu0 0
    %1133 = vmatprep.subr.bf16.mxu0 0
    %1134 = vmatpush1.bf16.msra.mxu0 0
    %1135 = vmatprep.subr.bf16.mxu0 0
    %1136 = vmatpush1.bf16.msra.mxu0 0
    %1137 = vmatprep.subr.bf16.mxu0 0
    %1138 = vmatpush1.bf16.msra.mxu0 0
    %1139 = vmatprep.subr.bf16.mxu0 0
    %1140 = vmatpush1.bf16.msra.mxu0 0
    %1141 = vmatprep.subr.bf16.mxu0 0
    %1142 = vmatpush1.bf16.msra.mxu0 0
    %1143 = vmatprep.subr.bf16.mxu0 0
    %1144 = vmatpush1.bf16.msra.mxu0 0
    %1145 = vmatprep.subr.bf16.mxu0 0
    %1146 = vmatpush1.bf16.msra.mxu0 0
    %1147 = vmatprep.subr.bf16.mxu0 0
    %1148 = vmatpush1.bf16.msra.mxu0 0
    %1149 = vmatprep.mubr.bf16.mxu0 0
    %1150 = vmatmul.mubr.bf16.gmra.mrb[0].mxu0 %v1065
    %v1151 = vpop.f32.mrb[0].mxu0
    %v1152 = vadd.f32 0.0, %v1151
    %v1153 = vpop.f32.mrb[0].mxu0
    %v1154 = vpop.f32.mrb[0].mxu0
    %v1155 = vpop.f32.mrb[0].mxu0
    %1156 = vdwg.mxu0
    %v1157 = vadd.f32 %v1028, %v1111
    %v1158 = vadd.f32 %v1029, %v1113
    %v1159 = vadd.f32 %v1030, %v1152
    %v1161 = vlaneseq
    %v1162 = vshrl.u32 %v1161, 7
    %v1163 = vsub.s32 0, %v1162
    %v1164 = vrot.slane %v16, %v1163
    %v1165 = vlaneseq
    %v1166 = vshrl.u32 %v1165, 7
    %v1167 = vsub.s32 1, %v1166
    %v1168 = vrot.slane %v16, %v1167
    %v1169 = vlaneseq
    %v1170 = vshrl.u32 %v1169, 7
    %v1171 = vsub.s32 2, %v1170
    %v1172 = vrot.slane %v16, %v1171
    %v1176 = vmul.f32 %v1157, %v1164
    %v1177 = vmul.f32 %v1158, %v1168
    %v1178 = vmul.f32 %v1159, %v1172
    %v1179 = vadd.f32 %v1176, %v1177
    %v1180 = vadd.f32 %v1179, %v1178
    %1181 = vadd.xlane.f32.xlu0 %v1180
    %v1182 = vpop.xlane.xlu0 %1181
    %v1183 = vmul.f32 %v1176, %v1157
    %v1184 = vmul.f32 %v1177, %v1158
    %v1185 = vmul.f32 %v1178, %v1159
    %v1186 = vadd.f32 %v1183, %v1184
    %v1187 = vadd.f32 %v1186, %v1185
    %1188 = vadd.xlane.f32.xlu0 %v1187
    %v1189 = vpop.xlane.xlu0 %1188
    %v1190 = vmul.f32 %v1182, 0.00390625
    %v1191 = vmul.f32 %v1189, 0.00390625
    %v1192 = vmul.f32 %v1190, %v1190
    %v1193 = vsub.f32 %v1191, %v1192
    %v1194 = vmax.f32 %v1193, 0.0
    %v1195 = vsub.f32 %v1157, %v1190
    %v1196 = vsub.f32 %v1158, %v1190
    %v1197 = vsub.f32 %v1159, %v1190
    %v1198 = vadd.f32 %v1194, 1e-05
    %v1199 = vrsqrt.pop %v1198
    %v1200 = vmul.f32 %v1195, %v1199
    %v1201 = vmul.f32 %v1196, %v1199
    %v1202 = vmul.f32 %v1197, %v1199
    %vm1203 = vcmp.gt.f32.partialorder %v1200, 0.0
    %vm1204 = vcmp.gt.f32.partialorder %v1201, 0.0
    %vm1205 = vcmp.gt.f32.partialorder %v1202, 0.0
    %v1206 = vmul.f32 %v1200, 0.01
    %v1207 = vmul.f32 %v1201, 0.01
    %v1208 = vmul.f32 %v1202, 0.01
    %v1209 = vsel %vm1203, %v1200, %v1206
    %v1210 = vsel %vm1204, %v1201, %v1207
    %v1211 = vsel %vm1205, %v1202, %v1208
    %1212 = vst [vmem:[#allocation2] sm:$0xff] %v1209
    %1213 = vst [vmem:[#allocation2 + $0x8] sm:$0xff] %v1210
    %1214 = vst [vmem:[#allocation2 + $0x10] sm:$0xff] %v1211
    %s1215 = scalar_lea.vmem %s2, 8
    %v1216 = vld [vmem:[%s1215] sm:$0x3f]
    %v1217 = vld [vmem:[%s0] sm:$0xf]
    %v1218 = vld [vmem:[%s1215] sm:$0xff]
    %v1219 = vld [vmem:[%s20] sm:$0xf]
    %v1221 = vcombine.high %v1218, %v1218
    %v1223 = vunpack.c.l.s4 1983009808
    %v1224 = vunpack.c.0.s8 %v1223
    %v1225 = vlaneseq
    %v1226 = vshrl.u32 %v1225, 7
    %v1227 = vsub.s32 %v1224, %v1226
    %v1228 = vrot.slane %v1218, %v1227
    %v1230 = vunpack.c.l.s4 1983009808
    %v1231 = vunpack.c.0.s8 %v1230
    %v1232 = vlaneseq
    %v1233 = vshrl.u32 %v1232, 7
    %v1234 = vsub.s32 %v1231, %v1233
    %v1235 = vrot.slane %v1221, %v1234
    %v1236 = vcombine.high %v1228, %v1228
    %v1237 = vcombine.high %v1235, %v1235
    %1238 = vrot.lane.b32.xlu0 %v1228, 127
    %v1239 = vpop.permute.xlu0 %1238
    %1240 = vrot.lane.b32.xlu0 %v1236, 127
    %v1241 = vpop.permute.xlu0 %1240
    %1242 = vrot.lane.b32.xlu0 %v1235, 127
    %v1243 = vpop.permute.xlu0 %1242
    %1244 = vrot.lane.b32.xlu0 %v1237, 127
    %v1245 = vpop.permute.xlu0 %1244
    %v1246 = vsel %vm48, %v1239, %v1241
    %v1247 = vsel %vm48, %v1241, %v1243
    %v1248 = vsel %vm48, %v1243, %v1245
    %v1250 = vsel %vm52, %v1219, 0
    %v1253 = vsel %vm56, %v1246, 0
    %v1256 = vsel %vm56, %v1247, 0
    %v1259 = vsel %vm56, %v1248, 0
    %1261 = vmatprep.subr.bf16.mxu0 %v1256
    %1262 = vmatpush1.bf16.msra.mxu0 %v1253
    %1263 = vmatprep.subr.bf16.mxu0 0
    %1264 = vmatpush1.bf16.msra.mxu0 0
    %1265 = vmatprep.subr.bf16.mxu0 0
    %1266 = vmatpush1.bf16.msra.mxu0 0
    %1267 = vmatprep.subr.bf16.mxu0 0
    %1268 = vmatpush1.bf16.msra.mxu0 0
    %1269 = vmatprep.subr.bf16.mxu0 0
    %1270 = vmatpush1.bf16.msra.mxu0 0
    %1271 = vmatprep.subr.bf16.mxu0 0
    %1272 = vmatpush1.bf16.msra.mxu0 0
    %1273 = vmatprep.subr.bf16.mxu0 0
    %1274 = vmatpush1.bf16.msra.mxu0 0
    %1275 = vmatprep.subr.bf16.mxu0 0
    %1276 = vmatpush1.bf16.msra.mxu0 0
    %1277 = vmatprep.subr.bf16.mxu0 0
    %1278 = vmatpush1.bf16.msra.mxu0 0
    %1279 = vmatprep.subr.bf16.mxu0 0
    %1280 = vmatpush1.bf16.msra.mxu0 0
    %1281 = vmatprep.subr.bf16.mxu0 0
    %1282 = vmatpush1.bf16.msra.mxu0 0
    %1283 = vmatprep.subr.bf16.mxu0 0
    %1284 = vmatpush1.bf16.msra.mxu0 0
    %1285 = vmatprep.subr.bf16.mxu0 0
    %1286 = vmatpush1.bf16.msra.mxu0 0
    %1287 = vmatprep.subr.bf16.mxu0 0
    %1288 = vmatpush1.bf16.msra.mxu0 0
    %1289 = vmatprep.subr.bf16.mxu0 0
    %1290 = vmatpush1.bf16.msra.mxu0 0
    %1291 = vmatprep.subr.bf16.mxu0 0
    %1292 = vmatpush1.bf16.msra.mxu0 0
    %1293 = vmatprep.mubr.bf16.mxu0 0
    %1294 = vmatmul.mubr.bf16.gmra.mrb[0].mxu0 %v1250
    %v1295 = vpop.f32.mrb[0].mxu0
    %v1296 = vadd.f32 0.0, %v1295
    %v1297 = vpop.f32.mrb[0].mxu0
    %v1298 = vadd.f32 0.0, %v1297
    %v1299 = vpop.f32.mrb[0].mxu0
    %v1300 = vpop.f32.mrb[0].mxu0
    %1301 = vdwg.mxu0
    %1302 = vmatprep.subr.bf16.mxu0 0
    %1303 = vmatpush1.bf16.msra.mxu0 %v1259
    %1304 = vmatprep.subr.bf16.mxu0 0
    %1305 = vmatpush1.bf16.msra.mxu0 0
    %1306 = vmatprep.subr.bf16.mxu0 0
    %1307 = vmatpush1.bf16.msra.mxu0 0
    %1308 = vmatprep.subr.bf16.mxu0 0
    %1309 = vmatpush1.bf16.msra.mxu0 0
    %1310 = vmatprep.subr.bf16.mxu0 0
    %1311 = vmatpush1.bf16.msra.mxu0 0
    %1312 = vmatprep.subr.bf16.mxu0 0
    %1313 = vmatpush1.bf16.msra.mxu0 0
    %1314 = vmatprep.subr.bf16.mxu0 0
    %1315 = vmatpush1.bf16.msra.mxu0 0
    %1316 = vmatprep.subr.bf16.mxu0 0
    %1317 = vmatpush1.bf16.msra.mxu0 0
    %1318 = vmatprep.subr.bf16.mxu0 0
    %1319 = vmatpush1.bf16.msra.mxu0 0
    %1320 = vmatprep.subr.bf16.mxu0 0
    %1321 = vmatpush1.bf16.msra.mxu0 0
    %1322 = vmatprep.subr.bf16.mxu0 0
    %1323 = vmatpush1.bf16.msra.mxu0 0
    %1324 = vmatprep.subr.bf16.mxu0 0
    %1325 = vmatpush1.bf16.msra.mxu0 0
    %1326 = vmatprep.subr.bf16.mxu0 0
    %1327 = vmatpush1.bf16.msra.mxu0 0
    %1328 = vmatprep.subr.bf16.mxu0 0
    %1329 = vmatpush1.bf16.msra.mxu0 0
    %1330 = vmatprep.subr.bf16.mxu0 0
    %1331 = vmatpush1.bf16.msra.mxu0 0
    %1332 = vmatprep.subr.bf16.mxu0 0
    %1333 = vmatpush1.bf16.msra.mxu0 0
    %1334 = vmatprep.mubr.bf16.mxu0 0
    %1335 = vmatmul.mubr.bf16.gmra.mrb[0].mxu0 %v1250
    %v1336 = vpop.f32.mrb[0].mxu0
    %v1337 = vadd.f32 0.0, %v1336
    %v1338 = vpop.f32.mrb[0].mxu0
    %v1339 = vpop.f32.mrb[0].mxu0
    %v1340 = vpop.f32.mrb[0].mxu0
    %1341 = vdwg.mxu0
    %v1343 = vcombine.high %v1216, %v1216
    %v1345 = vunpack.c.l.s4 1983009808
    %v1346 = vunpack.c.0.s8 %v1345
    %v1347 = vlaneseq
    %v1348 = vshrl.u32 %v1347, 7
    %v1349 = vsub.s32 %v1346, %v1348
    %v1350 = vrot.slane %v1216, %v1349
    %v1352 = vunpack.c.l.s4 1983009808
    %v1353 = vunpack.c.0.s8 %v1352
    %v1354 = vlaneseq
    %v1355 = vshrl.u32 %v1354, 7
    %v1356 = vsub.s32 %v1353, %v1355
    %v1357 = vrot.slane %v1343, %v1356
    %v1358 = vcombine.high %v1350, %v1350
    %v1360 = vsel %vm52, %v1217, 0
    %v1363 = vsel %vm56, %v1350, 0
    %v1366 = vsel %vm56, %v1358, 0
    %v1369 = vsel %vm56, %v1357, 0
    %1371 = vmatprep.subr.bf16.mxu0 %v1366
    %1372 = vmatpush1.bf16.msra.mxu0 %v1363
    %1373 = vmatprep.subr.bf16.mxu0 0
    %1374 = vmatpush1.bf16.msra.mxu0 0
    %1375 = vmatprep.subr.bf16.mxu0 0
    %1376 = vmatpush1.bf16.msra.mxu0 0
    %1377 = vmatprep.subr.bf16.mxu0 0
    %1378 = vmatpush1.bf16.msra.mxu0 0
    %1379 = vmatprep.subr.bf16.mxu0 0
    %1380 = vmatpush1.bf16.msra.mxu0 0
    %1381 = vmatprep.subr.bf16.mxu0 0
    %1382 = vmatpush1.bf16.msra.mxu0 0
    %1383 = vmatprep.subr.bf16.mxu0 0
    %1384 = vmatpush1.bf16.msra.mxu0 0
    %1385 = vmatprep.subr.bf16.mxu0 0
    %1386 = vmatpush1.bf16.msra.mxu0 0
    %1387 = vmatprep.subr.bf16.mxu0 0
    %1388 = vmatpush1.bf16.msra.mxu0 0
    %1389 = vmatprep.subr.bf16.mxu0 0
    %1390 = vmatpush1.bf16.msra.mxu0 0
    %1391 = vmatprep.subr.bf16.mxu0 0
    %1392 = vmatpush1.bf16.msra.mxu0 0
    %1393 = vmatprep.subr.bf16.mxu0 0
    %1394 = vmatpush1.bf16.msra.mxu0 0
    %1395 = vmatprep.subr.bf16.mxu0 0
    %1396 = vmatpush1.bf16.msra.mxu0 0
    %1397 = vmatprep.subr.bf16.mxu0 0
    %1398 = vmatpush1.bf16.msra.mxu0 0
    %1399 = vmatprep.subr.bf16.mxu0 0
    %1400 = vmatpush1.bf16.msra.mxu0 0
    %1401 = vmatprep.subr.bf16.mxu0 0
    %1402 = vmatpush1.bf16.msra.mxu0 0
    %1403 = vmatprep.mubr.bf16.mxu0 0
    %1404 = vmatmul.mubr.bf16.gmra.mrb[0].mxu0 %v1360
    %v1405 = vpop.f32.mrb[0].mxu0
    %v1406 = vadd.f32 %v1296, %v1405
    %v1407 = vpop.f32.mrb[0].mxu0
    %v1408 = vadd.f32 %v1298, %v1407
    %v1409 = vpop.f32.mrb[0].mxu0
    %v1410 = vpop.f32.mrb[0].mxu0
    %1411 = vdwg.mxu0
    %1412 = vmatprep.subr.bf16.mxu0 0
    %1413 = vmatpush1.bf16.msra.mxu0 %v1369
    %1414 = vmatprep.subr.bf16.mxu0 0
    %1415 = vmatpush1.bf16.msra.mxu0 0
    %1416 = vmatprep.subr.bf16.mxu0 0
    %1417 = vmatpush1.bf16.msra.mxu0 0
    %1418 = vmatprep.subr.bf16.mxu0 0
    %1419 = vmatpush1.bf16.msra.mxu0 0
    %1420 = vmatprep.subr.bf16.mxu0 0
    %1421 = vmatpush1.bf16.msra.mxu0 0
    %1422 = vmatprep.subr.bf16.mxu0 0
    %1423 = vmatpush1.bf16.msra.mxu0 0
    %1424 = vmatprep.subr.bf16.mxu0 0
    %1425 = vmatpush1.bf16.msra.mxu0 0
    %1426 = vmatprep.subr.bf16.mxu0 0
    %1427 = vmatpush1.bf16.msra.mxu0 0
    %1428 = vmatprep.subr.bf16.mxu0 0
    %1429 = vmatpush1.bf16.msra.mxu0 0
    %1430 = vmatprep.subr.bf16.mxu0 0
    %1431 = vmatpush1.bf16.msra.mxu0 0
    %1432 = vmatprep.subr.bf16.mxu0 0
    %1433 = vmatpush1.bf16.msra.mxu0 0
    %1434 = vmatprep.subr.bf16.mxu0 0
    %1435 = vmatpush1.bf16.msra.mxu0 0
    %1436 = vmatprep.subr.bf16.mxu0 0
    %1437 = vmatpush1.bf16.msra.mxu0 0
    %1438 = vmatprep.subr.bf16.mxu0 0
    %1439 = vmatpush1.bf16.msra.mxu0 0
    %1440 = vmatprep.subr.bf16.mxu0 0
    %1441 = vmatpush1.bf16.msra.mxu0 0
    %1442 = vmatprep.subr.bf16.mxu0 0
    %1443 = vmatpush1.bf16.msra.mxu0 0
    %1444 = vmatprep.mubr.bf16.mxu0 0
    %1445 = vmatmul.mubr.bf16.gmra.mrb[0].mxu0 %v1360
    %v1446 = vpop.f32.mrb[0].mxu0
    %v1447 = vadd.f32 %v1337, %v1446
    %v1448 = vpop.f32.mrb[0].mxu0
    %v1449 = vpop.f32.mrb[0].mxu0
    %v1450 = vpop.f32.mrb[0].mxu0
    %1451 = vdwg.mxu0
    %v1452 = vld [vmem:[%s1215] sm:$0xff]
    %v1453 = vld [vmem:[%s258] sm:$0xf]
    %v1455 = vcombine.high %v1452, %v1452
    %v1457 = vunpack.c.l.s4 1983009808
    %v1458 = vunpack.c.0.s8 %v1457
    %v1459 = vlaneseq
    %v1460 = vshrl.u32 %v1459, 7
    %v1461 = vsub.s32 %v1458, %v1460
    %v1462 = vrot.slane %v1452, %v1461
    %v1464 = vunpack.c.l.s4 1983009808
    %v1465 = vunpack.c.0.s8 %v1464
    %v1466 = vlaneseq
    %v1467 = vshrl.u32 %v1466, 7
    %v1468 = vsub.s32 %v1465, %v1467
    %v1469 = vrot.slane %v1455, %v1468
    %v1470 = vcombine.high %v1462, %v1462
    %v1471 = vcombine.high %v1469, %v1469
    %1472 = vrot.lane.b32.xlu0 %v1462, 126
    %v1473 = vpop.permute.xlu0 %1472
    %1474 = vrot.lane.b32.xlu0 %v1470, 126
    %v1475 = vpop.permute.xlu0 %1474
    %1476 = vrot.lane.b32.xlu0 %v1469, 126
    %v1477 = vpop.permute.xlu0 %1476
    %1478 = vrot.lane.b32.xlu0 %v1471, 126
    %v1479 = vpop.permute.xlu0 %1478
    %v1480 = vsel %vm286, %v1473, %v1475
    %v1481 = vsel %vm286, %v1475, %v1477
    %v1482 = vsel %vm286, %v1477, %v1479
    %v1484 = vsel %vm52, %v1453, 0
    %v1487 = vsel %vm56, %v1480, 0
    %v1490 = vsel %vm56, %v1481, 0
    %v1493 = vsel %vm56, %v1482, 0
    %1495 = vmatprep.subr.bf16.mxu0 %v1490
    %1496 = vmatpush1.bf16.msra.mxu0 %v1487
    %1497 = vmatprep.subr.bf16.mxu0 0
    %1498 = vmatpush1.bf16.msra.mxu0 0
    %1499 = vmatprep.subr.bf16.mxu0 0
    %1500 = vmatpush1.bf16.msra.mxu0 0
    %1501 = vmatprep.subr.bf16.mxu0 0
    %1502 = vmatpush1.bf16.msra.mxu0 0
    %1503 = vmatprep.subr.bf16.mxu0 0
    %1504 = vmatpush1.bf16.msra.mxu0 0
    %1505 = vmatprep.subr.bf16.mxu0 0
    %1506 = vmatpush1.bf16.msra.mxu0 0
    %1507 = vmatprep.subr.bf16.mxu0 0
    %1508 = vmatpush1.bf16.msra.mxu0 0
    %1509 = vmatprep.subr.bf16.mxu0 0
    %1510 = vmatpush1.bf16.msra.mxu0 0
    %1511 = vmatprep.subr.bf16.mxu0 0
    %1512 = vmatpush1.bf16.msra.mxu0 0
    %1513 = vmatprep.subr.bf16.mxu0 0
    %1514 = vmatpush1.bf16.msra.mxu0 0
    %1515 = vmatprep.subr.bf16.mxu0 0
    %1516 = vmatpush1.bf16.msra.mxu0 0
    %1517 = vmatprep.subr.bf16.mxu0 0
    %1518 = vmatpush1.bf16.msra.mxu0 0
    %1519 = vmatprep.subr.bf16.mxu0 0
    %1520 = vmatpush1.bf16.msra.mxu0 0
    %1521 = vmatprep.subr.bf16.mxu0 0
    %1522 = vmatpush1.bf16.msra.mxu0 0
    %1523 = vmatprep.subr.bf16.mxu0 0
    %1524 = vmatpush1.bf16.msra.mxu0 0
    %1525 = vmatprep.subr.bf16.mxu0 0
    %1526 = vmatpush1.bf16.msra.mxu0 0
    %1527 = vmatprep.mubr.bf16.mxu0 0
    %1528 = vmatmul.mubr.bf16.gmra.mrb[0].mxu0 %v1484
    %v1529 = vpop.f32.mrb[0].mxu0
    %v1530 = vadd.f32 0.0, %v1529
    %v1531 = vpop.f32.mrb[0].mxu0
    %v1532 = vadd.f32 0.0, %v1531
    %v1533 = vpop.f32.mrb[0].mxu0
    %v1534 = vpop.f32.mrb[0].mxu0
    %1535 = vdwg.mxu0
    %1536 = vmatprep.subr.bf16.mxu0 0
    %1537 = vmatpush1.bf16.msra.mxu0 %v1493
    %1538 = vmatprep.subr.bf16.mxu0 0
    %1539 = vmatpush1.bf16.msra.mxu0 0
    %1540 = vmatprep.subr.bf16.mxu0 0
    %1541 = vmatpush1.bf16.msra.mxu0 0
    %1542 = vmatprep.subr.bf16.mxu0 0
    %1543 = vmatpush1.bf16.msra.mxu0 0
    %1544 = vmatprep.subr.bf16.mxu0 0
    %1545 = vmatpush1.bf16.msra.mxu0 0
    %1546 = vmatprep.subr.bf16.mxu0 0
    %1547 = vmatpush1.bf16.msra.mxu0 0
    %1548 = vmatprep.subr.bf16.mxu0 0
    %1549 = vmatpush1.bf16.msra.mxu0 0
    %1550 = vmatprep.subr.bf16.mxu0 0
    %1551 = vmatpush1.bf16.msra.mxu0 0
    %1552 = vmatprep.subr.bf16.mxu0 0
    %1553 = vmatpush1.bf16.msra.mxu0 0
    %1554 = vmatprep.subr.bf16.mxu0 0
    %1555 = vmatpush1.bf16.msra.mxu0 0
    %1556 = vmatprep.subr.bf16.mxu0 0
    %1557 = vmatpush1.bf16.msra.mxu0 0
    %1558 = vmatprep.subr.bf16.mxu0 0
    %1559 = vmatpush1.bf16.msra.mxu0 0
    %1560 = vmatprep.subr.bf16.mxu0 0
    %1561 = vmatpush1.bf16.msra.mxu0 0
    %1562 = vmatprep.subr.bf16.mxu0 0
    %1563 = vmatpush1.bf16.msra.mxu0 0
    %1564 = vmatprep.subr.bf16.mxu0 0
    %1565 = vmatpush1.bf16.msra.mxu0 0
    %1566 = vmatprep.subr.bf16.mxu0 0
    %1567 = vmatpush1.bf16.msra.mxu0 0
    %1568 = vmatprep.mubr.bf16.mxu0 0
    %1569 = vmatmul.mubr.bf16.gmra.mrb[0].mxu0 %v1484
    %v1570 = vpop.f32.mrb[0].mxu0
    %v1571 = vadd.f32 0.0, %v1570
    %v1572 = vpop.f32.mrb[0].mxu0
    %v1573 = vpop.f32.mrb[0].mxu0
    %v1574 = vpop.f32.mrb[0].mxu0
    %1575 = vdwg.mxu0
    %v1576 = vadd.f32 %v1406, %v1530
    %v1577 = vadd.f32 %v1408, %v1532
    %v1578 = vadd.f32 %v1447, %v1571
    %v1579 = vld [vmem:[%s1215] sm:$0xff]
    %v1580 = vld [vmem:[%s387] sm:$0xf]
    %v1582 = vcombine.high %v1579, %v1579
    %v1584 = vunpack.c.l.s4 1983009808
    %v1585 = vunpack.c.0.s8 %v1584
    %v1586 = vlaneseq
    %v1587 = vshrl.u32 %v1586, 7
    %v1588 = vsub.s32 %v1585, %v1587
    %v1589 = vrot.slane %v1579, %v1588
    %v1591 = vunpack.c.l.s4 1983009808
    %v1592 = vunpack.c.0.s8 %v1591
    %v1593 = vlaneseq
    %v1594 = vshrl.u32 %v1593, 7
    %v1595 = vsub.s32 %v1592, %v1594
    %v1596 = vrot.slane %v1582, %v1595
    %v1597 = vcombine.high %v1589, %v1589
    %v1598 = vcombine.high %v1596, %v1596
    %1599 = vrot.lane.b32.xlu0 %v1589, 110
    %v1600 = vpop.permute.xlu0 %1599
    %1601 = vrot.lane.b32.xlu0 %v1597, 110
    %v1602 = vpop.permute.xlu0 %1601
    %1603 = vrot.lane.b32.xlu0 %v1596, 110
    %v1604 = vpop.permute.xlu0 %1603
    %1605 = vrot.lane.b32.xlu0 %v1598, 110
    %v1606 = vpop.permute.xlu0 %1605
    %v1607 = vsel %vm415, %v1600, %v1602
    %v1608 = vsel %vm415, %v1602, %v1604
    %v1609 = vsel %vm415, %v1604, %v1606
    %v1611 = vsel %vm52, %v1580, 0
    %v1614 = vsel %vm56, %v1607, 0
    %v1617 = vsel %vm56, %v1608, 0
    %v1620 = vsel %vm56, %v1609, 0
    %1622 = vmatprep.subr.bf16.mxu0 %v1617
    %1623 = vmatpush1.bf16.msra.mxu0 %v1614
    %1624 = vmatprep.subr.bf16.mxu0 0
    %1625 = vmatpush1.bf16.msra.mxu0 0
    %1626 = vmatprep.subr.bf16.mxu0 0
    %1627 = vmatpush1.bf16.msra.mxu0 0
    %1628 = vmatprep.subr.bf16.mxu0 0
    %1629 = vmatpush1.bf16.msra.mxu0 0
    %1630 = vmatprep.subr.bf16.mxu0 0
    %1631 = vmatpush1.bf16.msra.mxu0 0
    %1632 = vmatprep.subr.bf16.mxu0 0
    %1633 = vmatpush1.bf16.msra.mxu0 0
    %1634 = vmatprep.subr.bf16.mxu0 0
    %1635 = vmatpush1.bf16.msra.mxu0 0
    %1636 = vmatprep.subr.bf16.mxu0 0
    %1637 = vmatpush1.bf16.msra.mxu0 0
    %1638 = vmatprep.subr.bf16.mxu0 0
    %1639 = vmatpush1.bf16.msra.mxu0 0
    %1640 = vmatprep.subr.bf16.mxu0 0
    %1641 = vmatpush1.bf16.msra.mxu0 0
    %1642 = vmatprep.subr.bf16.mxu0 0
    %1643 = vmatpush1.bf16.msra.mxu0 0
    %1644 = vmatprep.subr.bf16.mxu0 0
    %1645 = vmatpush1.bf16.msra.mxu0 0
    %1646 = vmatprep.subr.bf16.mxu0 0
    %1647 = vmatpush1.bf16.msra.mxu0 0
    %1648 = vmatprep.subr.bf16.mxu0 0
    %1649 = vmatpush1.bf16.msra.mxu0 0
    %1650 = vmatprep.subr.bf16.mxu0 0
    %1651 = vmatpush1.bf16.msra.mxu0 0
    %1652 = vmatprep.subr.bf16.mxu0 0
    %1653 = vmatpush1.bf16.msra.mxu0 0
    %1654 = vmatprep.mubr.bf16.mxu0 0
    %1655 = vmatmul.mubr.bf16.gmra.mrb[0].mxu0 %v1611
    %v1656 = vpop.f32.mrb[0].mxu0
    %v1657 = vadd.f32 0.0, %v1656
    %v1658 = vpop.f32.mrb[0].mxu0
    %v1659 = vadd.f32 0.0, %v1658
    %v1660 = vpop.f32.mrb[0].mxu0
    %v1661 = vpop.f32.mrb[0].mxu0
    %1662 = vdwg.mxu0
    %1663 = vmatprep.subr.bf16.mxu0 0
    %1664 = vmatpush1.bf16.msra.mxu0 %v1620
    %1665 = vmatprep.subr.bf16.mxu0 0
    %1666 = vmatpush1.bf16.msra.mxu0 0
    %1667 = vmatprep.subr.bf16.mxu0 0
    %1668 = vmatpush1.bf16.msra.mxu0 0
    %1669 = vmatprep.subr.bf16.mxu0 0
    %1670 = vmatpush1.bf16.msra.mxu0 0
    %1671 = vmatprep.subr.bf16.mxu0 0
    %1672 = vmatpush1.bf16.msra.mxu0 0
    %1673 = vmatprep.subr.bf16.mxu0 0
    %1674 = vmatpush1.bf16.msra.mxu0 0
    %1675 = vmatprep.subr.bf16.mxu0 0
    %1676 = vmatpush1.bf16.msra.mxu0 0
    %1677 = vmatprep.subr.bf16.mxu0 0
    %1678 = vmatpush1.bf16.msra.mxu0 0
    %1679 = vmatprep.subr.bf16.mxu0 0
    %1680 = vmatpush1.bf16.msra.mxu0 0
    %1681 = vmatprep.subr.bf16.mxu0 0
    %1682 = vmatpush1.bf16.msra.mxu0 0
    %1683 = vmatprep.subr.bf16.mxu0 0
    %1684 = vmatpush1.bf16.msra.mxu0 0
    %1685 = vmatprep.subr.bf16.mxu0 0
    %1686 = vmatpush1.bf16.msra.mxu0 0
    %1687 = vmatprep.subr.bf16.mxu0 0
    %1688 = vmatpush1.bf16.msra.mxu0 0
    %1689 = vmatprep.subr.bf16.mxu0 0
    %1690 = vmatpush1.bf16.msra.mxu0 0
    %1691 = vmatprep.subr.bf16.mxu0 0
    %1692 = vmatpush1.bf16.msra.mxu0 0
    %1693 = vmatprep.subr.bf16.mxu0 0
    %1694 = vmatpush1.bf16.msra.mxu0 0
    %1695 = vmatprep.mubr.bf16.mxu0 0
    %1696 = vmatmul.mubr.bf16.gmra.mrb[0].mxu0 %v1611
    %v1697 = vpop.f32.mrb[0].mxu0
    %v1698 = vadd.f32 0.0, %v1697
    %v1699 = vpop.f32.mrb[0].mxu0
    %v1700 = vpop.f32.mrb[0].mxu0
    %v1701 = vpop.f32.mrb[0].mxu0
    %1702 = vdwg.mxu0
    %v1703 = vadd.f32 %v1576, %v1657
    %v1704 = vadd.f32 %v1577, %v1659
    %v1705 = vadd.f32 %v1578, %v1698
    %v1706 = vld [vmem:[%s1215] sm:$0xff]
    %v1707 = vld [vmem:[%s516] sm:$0xf]
    %v1709 = vcombine.high %v1706, %v1706
    %v1711 = vunpack.c.l.s4 1983009808
    %v1712 = vunpack.c.0.s8 %v1711
    %v1713 = vlaneseq
    %v1714 = vshrl.u32 %v1713, 7
    %v1715 = vsub.s32 %v1712, %v1714
    %v1716 = vrot.slane %v1706, %v1715
    %v1718 = vunpack.c.l.s4 1983009808
    %v1719 = vunpack.c.0.s8 %v1718
    %v1720 = vlaneseq
    %v1721 = vshrl.u32 %v1720, 7
    %v1722 = vsub.s32 %v1719, %v1721
    %v1723 = vrot.slane %v1709, %v1722
    %v1724 = vcombine.high %v1716, %v1716
    %v1725 = vcombine.high %v1723, %v1723
    %1726 = vrot.lane.b32.xlu0 %v1716, 109
    %v1727 = vpop.permute.xlu0 %1726
    %1728 = vrot.lane.b32.xlu0 %v1724, 109
    %v1729 = vpop.permute.xlu0 %1728
    %1730 = vrot.lane.b32.xlu0 %v1723, 109
    %v1731 = vpop.permute.xlu0 %1730
    %1732 = vrot.lane.b32.xlu0 %v1725, 109
    %v1733 = vpop.permute.xlu0 %1732
    %v1734 = vsel %vm544, %v1727, %v1729
    %v1735 = vsel %vm544, %v1729, %v1731
    %v1736 = vsel %vm544, %v1731, %v1733
    %v1738 = vsel %vm52, %v1707, 0
    %v1741 = vsel %vm56, %v1734, 0
    %v1744 = vsel %vm56, %v1735, 0
    %v1747 = vsel %vm56, %v1736, 0
    %1749 = vmatprep.subr.bf16.mxu0 %v1744
    %1750 = vmatpush1.bf16.msra.mxu0 %v1741
    %1751 = vmatprep.subr.bf16.mxu0 0
    %1752 = vmatpush1.bf16.msra.mxu0 0
    %1753 = vmatprep.subr.bf16.mxu0 0
    %1754 = vmatpush1.bf16.msra.mxu0 0
    %1755 = vmatprep.subr.bf16.mxu0 0
    %1756 = vmatpush1.bf16.msra.mxu0 0
    %1757 = vmatprep.subr.bf16.mxu0 0
    %1758 = vmatpush1.bf16.msra.mxu0 0
    %1759 = vmatprep.subr.bf16.mxu0 0
    %1760 = vmatpush1.bf16.msra.mxu0 0
    %1761 = vmatprep.subr.bf16.mxu0 0
    %1762 = vmatpush1.bf16.msra.mxu0 0
    %1763 = vmatprep.subr.bf16.mxu0 0
    %1764 = vmatpush1.bf16.msra.mxu0 0
    %1765 = vmatprep.subr.bf16.mxu0 0
    %1766 = vmatpush1.bf16.msra.mxu0 0
    %1767 = vmatprep.subr.bf16.mxu0 0
    %1768 = vmatpush1.bf16.msra.mxu0 0
    %1769 = vmatprep.subr.bf16.mxu0 0
    %1770 = vmatpush1.bf16.msra.mxu0 0
    %1771 = vmatprep.subr.bf16.mxu0 0
    %1772 = vmatpush1.bf16.msra.mxu0 0
    %1773 = vmatprep.subr.bf16.mxu0 0
    %1774 = vmatpush1.bf16.msra.mxu0 0
    %1775 = vmatprep.subr.bf16.mxu0 0
    %1776 = vmatpush1.bf16.msra.mxu0 0
    %1777 = vmatprep.subr.bf16.mxu0 0
    %1778 = vmatpush1.bf16.msra.mxu0 0
    %1779 = vmatprep.subr.bf16.mxu0 0
    %1780 = vmatpush1.bf16.msra.mxu0 0
    %1781 = vmatprep.mubr.bf16.mxu0 0
    %1782 = vmatmul.mubr.bf16.gmra.mrb[0].mxu0 %v1738
    %v1783 = vpop.f32.mrb[0].mxu0
    %v1784 = vadd.f32 0.0, %v1783
    %v1785 = vpop.f32.mrb[0].mxu0
    %v1786 = vadd.f32 0.0, %v1785
    %v1787 = vpop.f32.mrb[0].mxu0
    %v1788 = vpop.f32.mrb[0].mxu0
    %1789 = vdwg.mxu0
    %1790 = vmatprep.subr.bf16.mxu0 0
    %1791 = vmatpush1.bf16.msra.mxu0 %v1747
    %1792 = vmatprep.subr.bf16.mxu0 0
    %1793 = vmatpush1.bf16.msra.mxu0 0
    %1794 = vmatprep.subr.bf16.mxu0 0
    %1795 = vmatpush1.bf16.msra.mxu0 0
    %1796 = vmatprep.subr.bf16.mxu0 0
    %1797 = vmatpush1.bf16.msra.mxu0 0
    %1798 = vmatprep.subr.bf16.mxu0 0
    %1799 = vmatpush1.bf16.msra.mxu0 0
    %1800 = vmatprep.subr.bf16.mxu0 0
    %1801 = vmatpush1.bf16.msra.mxu0 0
    %1802 = vmatprep.subr.bf16.mxu0 0
    %1803 = vmatpush1.bf16.msra.mxu0 0
    %1804 = vmatprep.subr.bf16.mxu0 0
    %1805 = vmatpush1.bf16.msra.mxu0 0
    %1806 = vmatprep.subr.bf16.mxu0 0
    %1807 = vmatpush1.bf16.msra.mxu0 0
    %1808 = vmatprep.subr.bf16.mxu0 0
    %1809 = vmatpush1.bf16.msra.mxu0 0
    %1810 = vmatprep.subr.bf16.mxu0 0
    %1811 = vmatpush1.bf16.msra.mxu0 0
    %1812 = vmatprep.subr.bf16.mxu0 0
    %1813 = vmatpush1.bf16.msra.mxu0 0
    %1814 = vmatprep.subr.bf16.mxu0 0
    %1815 = vmatpush1.bf16.msra.mxu0 0
    %1816 = vmatprep.subr.bf16.mxu0 0
    %1817 = vmatpush1.bf16.msra.mxu0 0
    %1818 = vmatprep.subr.bf16.mxu0 0
    %1819 = vmatpush1.bf16.msra.mxu0 0
    %1820 = vmatprep.subr.bf16.mxu0 0
    %1821 = vmatpush1.bf16.msra.mxu0 0
    %1822 = vmatprep.mubr.bf16.mxu0 0
    %1823 = vmatmul.mubr.bf16.gmra.mrb[0].mxu0 %v1738
    %v1824 = vpop.f32.mrb[0].mxu0
    %v1825 = vadd.f32 0.0, %v1824
    %v1826 = vpop.f32.mrb[0].mxu0
    %v1827 = vpop.f32.mrb[0].mxu0
    %v1828 = vpop.f32.mrb[0].mxu0
    %1829 = vdwg.mxu0
    %v1830 = vadd.f32 %v1703, %v1784
    %v1831 = vadd.f32 %v1704, %v1786
    %v1832 = vadd.f32 %v1705, %v1825
    %v1833 = vld [vmem:[%s1215] sm:$0xff]
    %v1834 = vld [vmem:[%s645] sm:$0xf]
    %v1836 = vcombine.high %v1833, %v1833
    %v1838 = vunpack.c.l.s4 1983009808
    %v1839 = vunpack.c.0.s8 %v1838
    %v1840 = vlaneseq
    %v1841 = vshrl.u32 %v1840, 7
    %v1842 = vsub.s32 %v1839, %v1841
    %v1843 = vrot.slane %v1833, %v1842
    %v1845 = vunpack.c.l.s4 1983009808
    %v1846 = vunpack.c.0.s8 %v1845
    %v1847 = vlaneseq
    %v1848 = vshrl.u32 %v1847, 7
    %v1849 = vsub.s32 %v1846, %v1848
    %v1850 = vrot.slane %v1836, %v1849
    %v1851 = vcombine.high %v1843, %v1843
    %v1852 = vcombine.high %v1850, %v1850
    %1853 = vrot.lane.b32.xlu0 %v1843, 108
    %v1854 = vpop.permute.xlu0 %1853
    %1855 = vrot.lane.b32.xlu0 %v1851, 108
    %v1856 = vpop.permute.xlu0 %1855
    %1857 = vrot.lane.b32.xlu0 %v1850, 108
    %v1858 = vpop.permute.xlu0 %1857
    %1859 = vrot.lane.b32.xlu0 %v1852, 108
    %v1860 = vpop.permute.xlu0 %1859
    %v1861 = vsel %vm673, %v1854, %v1856
    %v1862 = vsel %vm673, %v1856, %v1858
    %v1863 = vsel %vm673, %v1858, %v1860
    %v1865 = vsel %vm52, %v1834, 0
    %v1868 = vsel %vm56, %v1861, 0
    %v1871 = vsel %vm56, %v1862, 0
    %v1874 = vsel %vm56, %v1863, 0
    %1876 = vmatprep.subr.bf16.mxu0 %v1871
    %1877 = vmatpush1.bf16.msra.mxu0 %v1868
    %1878 = vmatprep.subr.bf16.mxu0 0
    %1879 = vmatpush1.bf16.msra.mxu0 0
    %1880 = vmatprep.subr.bf16.mxu0 0
    %1881 = vmatpush1.bf16.msra.mxu0 0
    %1882 = vmatprep.subr.bf16.mxu0 0
    %1883 = vmatpush1.bf16.msra.mxu0 0
    %1884 = vmatprep.subr.bf16.mxu0 0
    %1885 = vmatpush1.bf16.msra.mxu0 0
    %1886 = vmatprep.subr.bf16.mxu0 0
    %1887 = vmatpush1.bf16.msra.mxu0 0
    %1888 = vmatprep.subr.bf16.mxu0 0
    %1889 = vmatpush1.bf16.msra.mxu0 0
    %1890 = vmatprep.subr.bf16.mxu0 0
    %1891 = vmatpush1.bf16.msra.mxu0 0
    %1892 = vmatprep.subr.bf16.mxu0 0
    %1893 = vmatpush1.bf16.msra.mxu0 0
    %1894 = vmatprep.subr.bf16.mxu0 0
    %1895 = vmatpush1.bf16.msra.mxu0 0
    %1896 = vmatprep.subr.bf16.mxu0 0
    %1897 = vmatpush1.bf16.msra.mxu0 0
    %1898 = vmatprep.subr.bf16.mxu0 0
    %1899 = vmatpush1.bf16.msra.mxu0 0
    %1900 = vmatprep.subr.bf16.mxu0 0
    %1901 = vmatpush1.bf16.msra.mxu0 0
    %1902 = vmatprep.subr.bf16.mxu0 0
    %1903 = vmatpush1.bf16.msra.mxu0 0
    %1904 = vmatprep.subr.bf16.mxu0 0
    %1905 = vmatpush1.bf16.msra.mxu0 0
    %1906 = vmatprep.subr.bf16.mxu0 0
    %1907 = vmatpush1.bf16.msra.mxu0 0
    %1908 = vmatprep.mubr.bf16.mxu0 0
    %1909 = vmatmul.mubr.bf16.gmra.mrb[0].mxu0 %v1865
    %v1910 = vpop.f32.mrb[0].mxu0
    %v1911 = vadd.f32 0.0, %v1910
    %v1912 = vpop.f32.mrb[0].mxu0
    %v1913 = vadd.f32 0.0, %v1912
    %v1914 = vpop.f32.mrb[0].mxu0
    %v1915 = vpop.f32.mrb[0].mxu0
    %1916 = vdwg.mxu0
    %1917 = vmatprep.subr.bf16.mxu0 0
    %1918 = vmatpush1.bf16.msra.mxu0 %v1874
    %1919 = vmatprep.subr.bf16.mxu0 0
    %1920 = vmatpush1.bf16.msra.mxu0 0
    %1921 = vmatprep.subr.bf16.mxu0 0
    %1922 = vmatpush1.bf16.msra.mxu0 0
    %1923 = vmatprep.subr.bf16.mxu0 0
    %1924 = vmatpush1.bf16.msra.mxu0 0
    %1925 = vmatprep.subr.bf16.mxu0 0
    %1926 = vmatpush1.bf16.msra.mxu0 0
    %1927 = vmatprep.subr.bf16.mxu0 0
    %1928 = vmatpush1.bf16.msra.mxu0 0
    %1929 = vmatprep.subr.bf16.mxu0 0
    %1930 = vmatpush1.bf16.msra.mxu0 0
    %1931 = vmatprep.subr.bf16.mxu0 0
    %1932 = vmatpush1.bf16.msra.mxu0 0
    %1933 = vmatprep.subr.bf16.mxu0 0
    %1934 = vmatpush1.bf16.msra.mxu0 0
    %1935 = vmatprep.subr.bf16.mxu0 0
    %1936 = vmatpush1.bf16.msra.mxu0 0
    %1937 = vmatprep.subr.bf16.mxu0 0
    %1938 = vmatpush1.bf16.msra.mxu0 0
    %1939 = vmatprep.subr.bf16.mxu0 0
    %1940 = vmatpush1.bf16.msra.mxu0 0
    %1941 = vmatprep.subr.bf16.mxu0 0
    %1942 = vmatpush1.bf16.msra.mxu0 0
    %1943 = vmatprep.subr.bf16.mxu0 0
    %1944 = vmatpush1.bf16.msra.mxu0 0
    %1945 = vmatprep.subr.bf16.mxu0 0
    %1946 = vmatpush1.bf16.msra.mxu0 0
    %1947 = vmatprep.subr.bf16.mxu0 0
    %1948 = vmatpush1.bf16.msra.mxu0 0
    %1949 = vmatprep.mubr.bf16.mxu0 0
    %1950 = vmatmul.mubr.bf16.gmra.mrb[0].mxu0 %v1865
    %v1951 = vpop.f32.mrb[0].mxu0
    %v1952 = vadd.f32 0.0, %v1951
    %v1953 = vpop.f32.mrb[0].mxu0
    %v1954 = vpop.f32.mrb[0].mxu0
    %v1955 = vpop.f32.mrb[0].mxu0
    %1956 = vdwg.mxu0
    %v1957 = vadd.f32 %v1830, %v1911
    %v1958 = vadd.f32 %v1831, %v1913
    %v1959 = vadd.f32 %v1832, %v1952
    %v1960 = vld [vmem:[%s1215] sm:$0xff]
    %v1961 = vld [vmem:[%s774] sm:$0xf]
    %v1963 = vcombine.high %v1960, %v1960
    %v1965 = vunpack.c.l.s4 1983009808
    %v1966 = vunpack.c.0.s8 %v1965
    %v1967 = vlaneseq
    %v1968 = vshrl.u32 %v1967, 7
    %v1969 = vsub.s32 %v1966, %v1968
    %v1970 = vrot.slane %v1960, %v1969
    %v1972 = vunpack.c.l.s4 1983009808
    %v1973 = vunpack.c.0.s8 %v1972
    %v1974 = vlaneseq
    %v1975 = vshrl.u32 %v1974, 7
    %v1976 = vsub.s32 %v1973, %v1975
    %v1977 = vrot.slane %v1963, %v1976
    %v1978 = vcombine.high %v1970, %v1970
    %v1979 = vcombine.high %v1977, %v1977
    %1980 = vrot.lane.b32.xlu0 %v1970, 92
    %v1981 = vpop.permute.xlu0 %1980
    %1982 = vrot.lane.b32.xlu0 %v1978, 92
    %v1983 = vpop.permute.xlu0 %1982
    %1984 = vrot.lane.b32.xlu0 %v1977, 92
    %v1985 = vpop.permute.xlu0 %1984
    %1986 = vrot.lane.b32.xlu0 %v1979, 92
    %v1987 = vpop.permute.xlu0 %1986
    %v1988 = vsel %vm802, %v1981, %v1983
    %v1989 = vsel %vm802, %v1983, %v1985
    %v1990 = vsel %vm802, %v1985, %v1987
    %v1992 = vsel %vm52, %v1961, 0
    %v1995 = vsel %vm56, %v1988, 0
    %v1998 = vsel %vm56, %v1989, 0
    %v2001 = vsel %vm56, %v1990, 0
    %2003 = vmatprep.subr.bf16.mxu0 %v1998
    %2004 = vmatpush1.bf16.msra.mxu0 %v1995
    %2005 = vmatprep.subr.bf16.mxu0 0
    %2006 = vmatpush1.bf16.msra.mxu0 0
    %2007 = vmatprep.subr.bf16.mxu0 0
    %2008 = vmatpush1.bf16.msra.mxu0 0
    %2009 = vmatprep.subr.bf16.mxu0 0
    %2010 = vmatpush1.bf16.msra.mxu0 0
    %2011 = vmatprep.subr.bf16.mxu0 0
    %2012 = vmatpush1.bf16.msra.mxu0 0
    %2013 = vmatprep.subr.bf16.mxu0 0
    %2014 = vmatpush1.bf16.msra.mxu0 0
    %2015 = vmatprep.subr.bf16.mxu0 0
    %2016 = vmatpush1.bf16.msra.mxu0 0
    %2017 = vmatprep.subr.bf16.mxu0 0
    %2018 = vmatpush1.bf16.msra.mxu0 0
    %2019 = vmatprep.subr.bf16.mxu0 0
    %2020 = vmatpush1.bf16.msra.mxu0 0
    %2021 = vmatprep.subr.bf16.mxu0 0
    %2022 = vmatpush1.bf16.msra.mxu0 0
    %2023 = vmatprep.subr.bf16.mxu0 0
    %2024 = vmatpush1.bf16.msra.mxu0 0
    %2025 = vmatprep.subr.bf16.mxu0 0
    %2026 = vmatpush1.bf16.msra.mxu0 0
    %2027 = vmatprep.subr.bf16.mxu0 0
    %2028 = vmatpush1.bf16.msra.mxu0 0
    %2029 = vmatprep.subr.bf16.mxu0 0
    %2030 = vmatpush1.bf16.msra.mxu0 0
    %2031 = vmatprep.subr.bf16.mxu0 0
    %2032 = vmatpush1.bf16.msra.mxu0 0
    %2033 = vmatprep.subr.bf16.mxu0 0
    %2034 = vmatpush1.bf16.msra.mxu0 0
    %2035 = vmatprep.mubr.bf16.mxu0 0
    %2036 = vmatmul.mubr.bf16.gmra.mrb[0].mxu0 %v1992
    %v2037 = vpop.f32.mrb[0].mxu0
    %v2038 = vadd.f32 0.0, %v2037
    %v2039 = vpop.f32.mrb[0].mxu0
    %v2040 = vadd.f32 0.0, %v2039
    %v2041 = vpop.f32.mrb[0].mxu0
    %v2042 = vpop.f32.mrb[0].mxu0
    %2043 = vdwg.mxu0
    %2044 = vmatprep.subr.bf16.mxu0 0
    %2045 = vmatpush1.bf16.msra.mxu0 %v2001
    %2046 = vmatprep.subr.bf16.mxu0 0
    %2047 = vmatpush1.bf16.msra.mxu0 0
    %2048 = vmatprep.subr.bf16.mxu0 0
    %2049 = vmatpush1.bf16.msra.mxu0 0
    %2050 = vmatprep.subr.bf16.mxu0 0
    %2051 = vmatpush1.bf16.msra.mxu0 0
    %2052 = vmatprep.subr.bf16.mxu0 0
    %2053 = vmatpush1.bf16.msra.mxu0 0
    %2054 = vmatprep.subr.bf16.mxu0 0
    %2055 = vmatpush1.bf16.msra.mxu0 0
    %2056 = vmatprep.subr.bf16.mxu0 0
    %2057 = vmatpush1.bf16.msra.mxu0 0
    %2058 = vmatprep.subr.bf16.mxu0 0
    %2059 = vmatpush1.bf16.msra.mxu0 0
    %2060 = vmatprep.subr.bf16.mxu0 0
    %2061 = vmatpush1.bf16.msra.mxu0 0
    %2062 = vmatprep.subr.bf16.mxu0 0
    %2063 = vmatpush1.bf16.msra.mxu0 0
    %2064 = vmatprep.subr.bf16.mxu0 0
    %2065 = vmatpush1.bf16.msra.mxu0 0
    %2066 = vmatprep.subr.bf16.mxu0 0
    %2067 = vmatpush1.bf16.msra.mxu0 0
    %2068 = vmatprep.subr.bf16.mxu0 0
    %2069 = vmatpush1.bf16.msra.mxu0 0
    %2070 = vmatprep.subr.bf16.mxu0 0
    %2071 = vmatpush1.bf16.msra.mxu0 0
    %2072 = vmatprep.subr.bf16.mxu0 0
    %2073 = vmatpush1.bf16.msra.mxu0 0
    %2074 = vmatprep.subr.bf16.mxu0 0
    %2075 = vmatpush1.bf16.msra.mxu0 0
    %2076 = vmatprep.mubr.bf16.mxu0 0
    %2077 = vmatmul.mubr.bf16.gmra.mrb[0].mxu0 %v1992
    %v2078 = vpop.f32.mrb[0].mxu0
    %v2079 = vadd.f32 0.0, %v2078
    %v2080 = vpop.f32.mrb[0].mxu0
    %v2081 = vpop.f32.mrb[0].mxu0
    %v2082 = vpop.f32.mrb[0].mxu0
    %2083 = vdwg.mxu0
    %v2084 = vadd.f32 %v1957, %v2038
    %v2085 = vadd.f32 %v1958, %v2040
    %v2086 = vadd.f32 %v1959, %v2079
    %v2087 = vld [vmem:[%s1215] sm:$0xff]
    %v2088 = vld [vmem:[%s903] sm:$0xf]
    %v2090 = vcombine.high %v2087, %v2087
    %v2092 = vunpack.c.l.s4 1983009808
    %v2093 = vunpack.c.0.s8 %v2092
    %v2094 = vlaneseq
    %v2095 = vshrl.u32 %v2094, 7
    %v2096 = vsub.s32 %v2093, %v2095
    %v2097 = vrot.slane %v2087, %v2096
    %v2099 = vunpack.c.l.s4 1983009808
    %v2100 = vunpack.c.0.s8 %v2099
    %v2101 = vlaneseq
    %v2102 = vshrl.u32 %v2101, 7
    %v2103 = vsub.s32 %v2100, %v2102
    %v2104 = vrot.slane %v2090, %v2103
    %v2105 = vcombine.high %v2097, %v2097
    %v2106 = vcombine.high %v2104, %v2104
    %2107 = vrot.lane.b32.xlu0 %v2097, 91
    %v2108 = vpop.permute.xlu0 %2107
    %2109 = vrot.lane.b32.xlu0 %v2105, 91
    %v2110 = vpop.permute.xlu0 %2109
    %2111 = vrot.lane.b32.xlu0 %v2104, 91
    %v2112 = vpop.permute.xlu0 %2111
    %2113 = vrot.lane.b32.xlu0 %v2106, 91
    %v2114 = vpop.permute.xlu0 %2113
    %v2115 = vsel %vm931, %v2108, %v2110
    %v2116 = vsel %vm931, %v2110, %v2112
    %v2117 = vsel %vm931, %v2112, %v2114
    %v2119 = vsel %vm52, %v2088, 0
    %v2122 = vsel %vm56, %v2115, 0
    %v2125 = vsel %vm56, %v2116, 0
    %v2128 = vsel %vm56, %v2117, 0
    %2130 = vmatprep.subr.bf16.mxu0 %v2125
    %2131 = vmatpush1.bf16.msra.mxu0 %v2122
    %2132 = vmatprep.subr.bf16.mxu0 0
    %2133 = vmatpush1.bf16.msra.mxu0 0
    %2134 = vmatprep.subr.bf16.mxu0 0
    %2135 = vmatpush1.bf16.msra.mxu0 0
    %2136 = vmatprep.subr.bf16.mxu0 0
    %2137 = vmatpush1.bf16.msra.mxu0 0
    %2138 = vmatprep.subr.bf16.mxu0 0
    %2139 = vmatpush1.bf16.msra.mxu0 0
    %2140 = vmatprep.subr.bf16.mxu0 0
    %2141 = vmatpush1.bf16.msra.mxu0 0
    %2142 = vmatprep.subr.bf16.mxu0 0
    %2143 = vmatpush1.bf16.msra.mxu0 0
    %2144 = vmatprep.subr.bf16.mxu0 0
    %2145 = vmatpush1.bf16.msra.mxu0 0
    %2146 = vmatprep.subr.bf16.mxu0 0
    %2147 = vmatpush1.bf16.msra.mxu0 0
    %2148 = vmatprep.subr.bf16.mxu0 0
    %2149 = vmatpush1.bf16.msra.mxu0 0
    %2150 = vmatprep.subr.bf16.mxu0 0
    %2151 = vmatpush1.bf16.msra.mxu0 0
    %2152 = vmatprep.subr.bf16.mxu0 0
    %2153 = vmatpush1.bf16.msra.mxu0 0
    %2154 = vmatprep.subr.bf16.mxu0 0
    %2155 = vmatpush1.bf16.msra.mxu0 0
    %2156 = vmatprep.subr.bf16.mxu0 0
    %2157 = vmatpush1.bf16.msra.mxu0 0
    %2158 = vmatprep.subr.bf16.mxu0 0
    %2159 = vmatpush1.bf16.msra.mxu0 0
    %2160 = vmatprep.subr.bf16.mxu0 0
    %2161 = vmatpush1.bf16.msra.mxu0 0
    %2162 = vmatprep.mubr.bf16.mxu0 0
    %2163 = vmatmul.mubr.bf16.gmra.mrb[0].mxu0 %v2119
    %v2164 = vpop.f32.mrb[0].mxu0
    %v2165 = vadd.f32 0.0, %v2164
    %v2166 = vpop.f32.mrb[0].mxu0
    %v2167 = vadd.f32 0.0, %v2166
    %v2168 = vpop.f32.mrb[0].mxu0
    %v2169 = vpop.f32.mrb[0].mxu0
    %2170 = vdwg.mxu0
    %2171 = vmatprep.subr.bf16.mxu0 0
    %2172 = vmatpush1.bf16.msra.mxu0 %v2128
    %2173 = vmatprep.subr.bf16.mxu0 0
    %2174 = vmatpush1.bf16.msra.mxu0 0
    %2175 = vmatprep.subr.bf16.mxu0 0
    %2176 = vmatpush1.bf16.msra.mxu0 0
    %2177 = vmatprep.subr.bf16.mxu0 0
    %2178 = vmatpush1.bf16.msra.mxu0 0
    %2179 = vmatprep.subr.bf16.mxu0 0
    %2180 = vmatpush1.bf16.msra.mxu0 0
    %2181 = vmatprep.subr.bf16.mxu0 0
    %2182 = vmatpush1.bf16.msra.mxu0 0
    %2183 = vmatprep.subr.bf16.mxu0 0
    %2184 = vmatpush1.bf16.msra.mxu0 0
    %2185 = vmatprep.subr.bf16.mxu0 0
    %2186 = vmatpush1.bf16.msra.mxu0 0
    %2187 = vmatprep.subr.bf16.mxu0 0
    %2188 = vmatpush1.bf16.msra.mxu0 0
    %2189 = vmatprep.subr.bf16.mxu0 0
    %2190 = vmatpush1.bf16.msra.mxu0 0
    %2191 = vmatprep.subr.bf16.mxu0 0
    %2192 = vmatpush1.bf16.msra.mxu0 0
    %2193 = vmatprep.subr.bf16.mxu0 0
    %2194 = vmatpush1.bf16.msra.mxu0 0
    %2195 = vmatprep.subr.bf16.mxu0 0
    %2196 = vmatpush1.bf16.msra.mxu0 0
    %2197 = vmatprep.subr.bf16.mxu0 0
    %2198 = vmatpush1.bf16.msra.mxu0 0
    %2199 = vmatprep.subr.bf16.mxu0 0
    %2200 = vmatpush1.bf16.msra.mxu0 0
    %2201 = vmatprep.subr.bf16.mxu0 0
    %2202 = vmatpush1.bf16.msra.mxu0 0
    %2203 = vmatprep.mubr.bf16.mxu0 0
    %2204 = vmatmul.mubr.bf16.gmra.mrb[0].mxu0 %v2119
    %v2205 = vpop.f32.mrb[0].mxu0
    %v2206 = vadd.f32 0.0, %v2205
    %v2207 = vpop.f32.mrb[0].mxu0
    %v2208 = vpop.f32.mrb[0].mxu0
    %v2209 = vpop.f32.mrb[0].mxu0
    %2210 = vdwg.mxu0
    %v2211 = vadd.f32 %v2084, %v2165
    %v2212 = vadd.f32 %v2085, %v2167
    %v2213 = vadd.f32 %v2086, %v2206
    %v2214 = vld [vmem:[%s1215] sm:$0xff]
    %v2215 = vld [vmem:[%s1032] sm:$0xf]
    %v2217 = vcombine.high %v2214, %v2214
    %v2219 = vunpack.c.l.s4 1983009808
    %v2220 = vunpack.c.0.s8 %v2219
    %v2221 = vlaneseq
    %v2222 = vshrl.u32 %v2221, 7
    %v2223 = vsub.s32 %v2220, %v2222
    %v2224 = vrot.slane %v2214, %v2223
    %v2226 = vunpack.c.l.s4 1983009808
    %v2227 = vunpack.c.0.s8 %v2226
    %v2228 = vlaneseq
    %v2229 = vshrl.u32 %v2228, 7
    %v2230 = vsub.s32 %v2227, %v2229
    %v2231 = vrot.slane %v2217, %v2230
    %v2232 = vcombine.high %v2224, %v2224
    %v2233 = vcombine.high %v2231, %v2231
    %2234 = vrot.lane.b32.xlu0 %v2224, 90
    %v2235 = vpop.permute.xlu0 %2234
    %2236 = vrot.lane.b32.xlu0 %v2232, 90
    %v2237 = vpop.permute.xlu0 %2236
    %2238 = vrot.lane.b32.xlu0 %v2231, 90
    %v2239 = vpop.permute.xlu0 %2238
    %2240 = vrot.lane.b32.xlu0 %v2233, 90
    %v2241 = vpop.permute.xlu0 %2240
    %v2242 = vsel %vm1060, %v2235, %v2237
    %v2243 = vsel %vm1060, %v2237, %v2239
    %v2244 = vsel %vm1060, %v2239, %v2241
    %v2246 = vsel %vm52, %v2215, 0
    %v2249 = vsel %vm56, %v2242, 0
    %v2252 = vsel %vm56, %v2243, 0
    %v2255 = vsel %vm56, %v2244, 0
    %2257 = vmatprep.subr.bf16.mxu0 %v2252
    %2258 = vmatpush1.bf16.msra.mxu0 %v2249
    %2259 = vmatprep.subr.bf16.mxu0 0
    %2260 = vmatpush1.bf16.msra.mxu0 0
    %2261 = vmatprep.subr.bf16.mxu0 0
    %2262 = vmatpush1.bf16.msra.mxu0 0
    %2263 = vmatprep.subr.bf16.mxu0 0
    %2264 = vmatpush1.bf16.msra.mxu0 0
    %2265 = vmatprep.subr.bf16.mxu0 0
    %2266 = vmatpush1.bf16.msra.mxu0 0
    %2267 = vmatprep.subr.bf16.mxu0 0
    %2268 = vmatpush1.bf16.msra.mxu0 0
    %2269 = vmatprep.subr.bf16.mxu0 0
    %2270 = vmatpush1.bf16.msra.mxu0 0
    %2271 = vmatprep.subr.bf16.mxu0 0
    %2272 = vmatpush1.bf16.msra.mxu0 0
    %2273 = vmatprep.subr.bf16.mxu0 0
    %2274 = vmatpush1.bf16.msra.mxu0 0
    %2275 = vmatprep.subr.bf16.mxu0 0
    %2276 = vmatpush1.bf16.msra.mxu0 0
    %2277 = vmatprep.subr.bf16.mxu0 0
    %2278 = vmatpush1.bf16.msra.mxu0 0
    %2279 = vmatprep.subr.bf16.mxu0 0
    %2280 = vmatpush1.bf16.msra.mxu0 0
    %2281 = vmatprep.subr.bf16.mxu0 0
    %2282 = vmatpush1.bf16.msra.mxu0 0
    %2283 = vmatprep.subr.bf16.mxu0 0
    %2284 = vmatpush1.bf16.msra.mxu0 0
    %2285 = vmatprep.subr.bf16.mxu0 0
    %2286 = vmatpush1.bf16.msra.mxu0 0
    %2287 = vmatprep.subr.bf16.mxu0 0
    %2288 = vmatpush1.bf16.msra.mxu0 0
    %2289 = vmatprep.mubr.bf16.mxu0 0
    %2290 = vmatmul.mubr.bf16.gmra.mrb[0].mxu0 %v2246
    %v2291 = vpop.f32.mrb[0].mxu0
    %v2292 = vadd.f32 0.0, %v2291
    %v2293 = vpop.f32.mrb[0].mxu0
    %v2294 = vadd.f32 0.0, %v2293
    %v2295 = vpop.f32.mrb[0].mxu0
    %v2296 = vpop.f32.mrb[0].mxu0
    %2297 = vdwg.mxu0
    %2298 = vmatprep.subr.bf16.mxu0 0
    %2299 = vmatpush1.bf16.msra.mxu0 %v2255
    %2300 = vmatprep.subr.bf16.mxu0 0
    %2301 = vmatpush1.bf16.msra.mxu0 0
    %2302 = vmatprep.subr.bf16.mxu0 0
    %2303 = vmatpush1.bf16.msra.mxu0 0
    %2304 = vmatprep.subr.bf16.mxu0 0
    %2305 = vmatpush1.bf16.msra.mxu0 0
    %2306 = vmatprep.subr.bf16.mxu0 0
    %2307 = vmatpush1.bf16.msra.mxu0 0
    %2308 = vmatprep.subr.bf16.mxu0 0
    %2309 = vmatpush1.bf16.msra.mxu0 0
    %2310 = vmatprep.subr.bf16.mxu0 0
    %2311 = vmatpush1.bf16.msra.mxu0 0
    %2312 = vmatprep.subr.bf16.mxu0 0
    %2313 = vmatpush1.bf16.msra.mxu0 0
    %2314 = vmatprep.subr.bf16.mxu0 0
    %2315 = vmatpush1.bf16.msra.mxu0 0
    %2316 = vmatprep.subr.bf16.mxu0 0
    %2317 = vmatpush1.bf16.msra.mxu0 0
    %2318 = vmatprep.subr.bf16.mxu0 0
    %2319 = vmatpush1.bf16.msra.mxu0 0
    %2320 = vmatprep.subr.bf16.mxu0 0
    %2321 = vmatpush1.bf16.msra.mxu0 0
    %2322 = vmatprep.subr.bf16.mxu0 0
    %2323 = vmatpush1.bf16.msra.mxu0 0
    %2324 = vmatprep.subr.bf16.mxu0 0
    %2325 = vmatpush1.bf16.msra.mxu0 0
    %2326 = vmatprep.subr.bf16.mxu0 0
    %2327 = vmatpush1.bf16.msra.mxu0 0
    %2328 = vmatprep.subr.bf16.mxu0 0
    %2329 = vmatpush1.bf16.msra.mxu0 0
    %2330 = vmatprep.mubr.bf16.mxu0 0
    %2331 = vmatmul.mubr.bf16.gmra.mrb[0].mxu0 %v2246
    %v2332 = vpop.f32.mrb[0].mxu0
    %v2333 = vadd.f32 0.0, %v2332
    %v2334 = vpop.f32.mrb[0].mxu0
    %v2335 = vpop.f32.mrb[0].mxu0
    %v2336 = vpop.f32.mrb[0].mxu0
    %2337 = vdwg.mxu0
    %v2338 = vadd.f32 %v2211, %v2292
    %v2339 = vadd.f32 %v2212, %v2294
    %v2340 = vadd.f32 %v2213, %v2333
    %v2341 = vmul.f32 %v2338, %v1164
    %v2342 = vmul.f32 %v2339, %v1168
    %v2343 = vmul.f32 %v2340, %v1172
    %v2344 = vadd.f32 %v2341, %v2342
    %v2345 = vadd.f32 %v2344, %v2343
    %2346 = vadd.xlane.f32.xlu0 %v2345
    %v2347 = vpop.xlane.xlu0 %2346
    %v2348 = vmul.f32 %v2341, %v2338
    %v2349 = vmul.f32 %v2342, %v2339
    %v2350 = vmul.f32 %v2343, %v2340
    %v2351 = vadd.f32 %v2348, %v2349
    %v2352 = vadd.f32 %v2351, %v2350
    %2353 = vadd.xlane.f32.xlu0 %v2352
    %v2354 = vpop.xlane.xlu0 %2353
    %v2355 = vmul.f32 %v2347, 0.00390625
    %v2356 = vmul.f32 %v2354, 0.00390625
    %v2357 = vmul.f32 %v2355, %v2355
    %v2358 = vsub.f32 %v2356, %v2357
    %v2359 = vmax.f32 %v2358, 0.0
    %v2360 = vsub.f32 %v2338, %v2355
    %v2361 = vsub.f32 %v2339, %v2355
    %v2362 = vsub.f32 %v2340, %v2355
    %v2363 = vadd.f32 %v2359, 1e-05
    %v2364 = vrsqrt.pop %v2363
    %v2365 = vmul.f32 %v2360, %v2364
    %v2366 = vmul.f32 %v2361, %v2364
    %v2367 = vmul.f32 %v2362, %v2364
    %vm2368 = vcmp.gt.f32.partialorder %v2365, 0.0
    %vm2369 = vcmp.gt.f32.partialorder %v2366, 0.0
    %vm2370 = vcmp.gt.f32.partialorder %v2367, 0.0
    %v2371 = vmul.f32 %v2365, 0.01
    %v2372 = vmul.f32 %v2366, 0.01
    %v2373 = vmul.f32 %v2367, 0.01
    %v2374 = vsel %vm2368, %v2365, %v2371
    %v2375 = vsel %vm2369, %v2366, %v2372
    %v2376 = vsel %vm2370, %v2367, %v2373
    %s2377 = scalar_lea.vmem [#allocation2], 24
    %2378 = vst [vmem:[%s2377] sm:$0xff] %v2374
    %2379 = vst [vmem:[%s2377 + $0x8] sm:$0xff] %v2375
    %2380 = vst [vmem:[%s2377 + $0x10] sm:$0xff] %v2376
    // Predicated region
    $region14: #{tpu_custom_call.1} parent=1 // pred_check
      _
    $region15: #{tpu_custom_call.1} parent=1 // pred_check_branch
      %2382 = sbr.rel (0) target = $region17
    $region16: #{tpu_custom_call.1} parent=1 // pred_region
      %s2384 = ssub.s32 768, 768
      %2385 = vsyncadd [#allocation3], %s2384
      %s2386 = sshll.u32 [#allocation2], 4
      %s2387 = int_to_ptr.vmem [resolvable:$true] %s2386
      %2392 = dma.vmem_to_hbm [thread:$0]  %s2387, 768, %s3, [#allocation3], 384, 384, 24
    $region17: #{tpu_custom_call.1} parent=1 // pred_fallthru
      _
    // Predicated region
    $region18: #{tpu_custom_call.1} parent=1 // pred_check
      _
    $region19: #{tpu_custom_call.1} parent=1 // pred_check_branch
      %2394 = sbr.rel (0) target = $region21
    $region20: #{tpu_custom_call.1} parent=1 // pred_region
      %2395 = dma.done [#allocation3], 768
    $region21: #{tpu_custom_call.1} parent=1 // pred_fallthru
      _
    %2396 = vsyncpa [#allocation3], 1

</llo_original>
